<compile_context>
chip_gen: v7x
topology: tpu7x:2x2x1
jax: 0.10.0
libtpu: 0.0.40
codegen_flags: <defaults>
</compile_context>

<pallas_src>
import functools

import jax
import jax.numpy as jnp
from jax.experimental import pallas as pl
from jax.experimental.pallas import tpu as pltpu


def _round_up(v, m):
    return (v + m - 1) // m * m


def _vmem_capacity_bytes():
    try:
        return int(pltpu.get_tpu_info().vmem_capacity_bytes)
    except Exception:
        return 64 * 1024 * 1024  # conservative default: v7x per-TensorCore VMEM


def _spatial_transform_kernel(Hp, Wp, Wq, im_ref, xy_ref, hh_ref, xx_ref, out_ref):
    """One (batch, position-tile) grid step of separable bilinear resampling.

    im_ref : (1, C*Wq, Hp)  zero-padded image, channel-planar: x on sublanes,
                            y on lanes; im_ref[0][c*Wq + x, y] = im_pad[y, x, c]
    xy_ref : (1, 2, TN)     absolute sampling coords (row 0: x, row 1: y),
                            already including the +1 zero-pad offset
    hh_ref : (Hp, TN)       row-index iota   (constant, resident in VMEM)
    xx_ref : (Wq, TN)       column-index iota (constant, resident in VMEM)
    out_ref: (1, C, TN)     channels on sublanes, positions on lanes
    """
    C = out_ref.shape[1]
    TN = out_ref.shape[2]

    xy = xy_ref[0]                      # (2, TN) float32
    x = xy[0:1, :]                      # (1, TN)
    y = xy[1:2, :]                      # (1, TN)

    fx = jnp.floor(x).astype(jnp.int32)
    fy = jnp.floor(y).astype(jnp.int32)
    x0 = jnp.clip(fx, 0, Wp - 1)
    x1 = jnp.clip(fx + 1, 0, Wp - 1)
    y0 = jnp.clip(fy, 0, Hp - 1)
    y1 = jnp.clip(fy + 1, 0, Hp - 1)

    # Weights use the *clamped* upper corner, exactly as the torch code does.
    wx0 = x1.astype(jnp.float32) - x    # weight of column x0
    wy0 = y1.astype(jnp.float32) - y    # weight of row y0
    wx1 = 1.0 - wx0                     # weight of column x1
    wy1 = 1.0 - wy0                     # weight of row y1

    # ---- stage 1: row blend via one MXU matmul -----------------------------
    #   ry[h, n] = wy0[n]*(h==y0[n]) + wy1[n]*(h==y1[n])       shape (Hp, TN)
    hh = hh_ref[...]
    ry = (wy0 * (hh == y0).astype(jnp.float32)
          + wy1 * (hh == y1).astype(jnp.float32))
    ry = ry.astype(im_ref.dtype)        # bf16 MXU operands (f32 accumulation)
    g = jnp.dot(im_ref[0], ry, preferred_element_type=jnp.float32)  # (C*Wq, TN)

    # ---- stage 2: column blend (shared selector + per-channel reduce) ------
    xx = xx_ref[...]
    sx = (wx0 * (xx == x0).astype(jnp.float32)
          + wx1 * (xx == x1).astype(jnp.float32))                   # (Wq, TN)

    g3 = g.reshape(C, Wq, TN)           # layout-free split: Wq is a multiple of 8
    out_ref[0] = jnp.sum(sx[None, :, :] * g3, axis=1)               # one (C, TN) store


def _spatial_transformation_impl(moving_image, deformation_matrix, *, tile_n,
                                 compute_dtype):
    B, H, W, C = moving_image.shape
    Hp, Wp = H + 2, W + 2
    Wq = _round_up(Wp, 8)               # sublane-aligned channel bands
    N = H * W

    itemsize_im = jnp.dtype(compute_dtype).itemsize

    # ---- size TN against the VMEM budget of this TPU generation ------------
    vmem_cap = _vmem_capacity_bytes()
    budget = int(vmem_cap * 0.70)       # headroom for compiler temporaries
    per_lane = (Hp * 4 + Hp * itemsize_im   # ry (f32 build + MXU-dtype copy)
                + Hp * 4 + Wq * 4           # hh / xx iota inputs (resident)
                + Wq * 4                    # sx selector
                + 2 * C * Wq * 4            # g and the sx*g3 blend temporary
                + (C + 2) * 4 * 2)          # out / xy blocks (double-buffered)
    fixed = C * Wq * Hp * itemsize_im       # resident image block (single-buffered)
    tn_cap = max((budget - fixed) // per_lane, 256)
    tn_cap = max(256, (tn_cap // 256) * 256)

    TN = min(_round_up(max(tile_n, 128), 256), tn_cap, _round_up(N, 128))
    N_pad = _round_up(N, TN)
    num_tiles = N_pad // TN

    # ---- layout glue (plain XLA): pad, go channel-planar, put the row (y)
    # axis on lanes so it is the contraction axis of the stage-1 matmul. ------
    im = jnp.pad(moving_image.astype(jnp.float32),
                 ((0, 0), (1, 1), (1, 1), (0, 0)))          # (B, Hp, Wp, C)
    imT = jnp.transpose(im, (0, 3, 2, 1))                   # (B, C, Wp, Hp)
    imT = jnp.pad(imT, ((0, 0), (0, 0), (0, Wq - Wp), (0, 0)))
    imT = imT.reshape(B, C * Wq, Hp).astype(compute_dtype)

    dmat = deformation_matrix.astype(jnp.float32)
    xm = jnp.arange(W, dtype=jnp.float32)[None, :]
    ym = jnp.arange(H, dtype=jnp.float32)[:, None]
    xs = (dmat[..., 0] + xm + 1.0).reshape(B, N)            # +1: zero-pad offset
    ys = (dmat[..., 1] + ym + 1.0).reshape(B, N)
    xy = jnp.stack([xs, ys], axis=1)                        # (B, 2, N)
    if N_pad != N:
        xy = jnp.pad(xy, ((0, 0), (0, 0), (0, N_pad - N)))

    # Constant index grids, DMAed once and kept resident across all steps.
    hh = jax.lax.broadcasted_iota(jnp.int32, (Hp, TN), 0)
    xx = jax.lax.broadcasted_iota(jnp.int32, (Wq, TN), 0)

    kernel = functools.partial(_spatial_transform_kernel, Hp, Wp, Wq)
    vmem_limit = int(vmem_cap * 0.85)

    def build(single_buffer_resident):
        extra = ({"pipeline_mode": pl.Buffered(1)}
                 if single_buffer_resident else {})
        return pl.pallas_call(
            kernel,
            out_shape=jax.ShapeDtypeStruct((B, C, N_pad), jnp.float32),
            grid_spec=pltpu.PrefetchScalarGridSpec(
                num_scalar_prefetch=0,
                grid=(B, num_tiles),
                in_specs=[
                    # image block constant along the tile axis -> resident
                    pl.BlockSpec((1, C * Wq, Hp), lambda b, t: (b, 0, 0), **extra),
                    pl.BlockSpec((1, 2, TN), lambda b, t: (b, 0, t)),
                    pl.BlockSpec((Hp, TN), lambda b, t: (0, 0), **extra),
                    pl.BlockSpec((Wq, TN), lambda b, t: (0, 0), **extra),
                ],
                out_specs=pl.BlockSpec((1, C, TN), lambda b, t: (b, 0, t)),
            ),
            compiler_params=pltpu.CompilerParams(
                dimension_semantics=("parallel", "parallel"),
                vmem_limit_bytes=vmem_limit),
        )

    try:
        out = build(True)(imT, xy, hh, xx)
    except Exception:
        # Fallback for jax builds that reject single-buffered pipeline_mode.
        out = build(False)(imT, xy, hh, xx)

    out = out[:, :, :N].reshape(B, C, H, W)
    return jnp.transpose(out, (0, 2, 3, 1))


def spatial_transformation(moving_image, deformation_matrix, *, tile_n=2048,
                           compute_dtype=jnp.bfloat16):
    """Pallas implementation of SpatialTransformation.forward.

    compute_dtype: dtype of the stage-1 MXU operands (accumulation is always
    f32).  bfloat16 (default) trades ~3 decimal digits on the row-blend for a
    3-4x MXU-rate win (biggest on v5e); pass jnp.float32 for exact results.
    """
    B, H, W, C = moving_image.shape
    if W > H:
        # Contract the larger spatial dim on the MXU: transpose the problem
        # (swap H<->W, swap dx<->dy), solve, transpose the result back.
        im_t = jnp.transpose(moving_image, (0, 2, 1, 3))
        d_t = jnp.transpose(
            jnp.stack([deformation_matrix[..., 1], deformation_matrix[..., 0]],
                      axis=-1),
            (0, 2, 1, 3))
        out_t = _spatial_transformation_impl(im_t, d_t, tile_n=tile_n,
                                             compute_dtype=compute_dtype)
        return jnp.transpose(out_t, (0, 2, 1, 3))
    return _spatial_transformation_impl(moving_image, deformation_matrix,
                                        tile_n=tile_n,
                                        compute_dtype=compute_dtype)


def _reference(moving_image, deformation_matrix):
    """Pure-JAX replica of the PyTorch forward (for correctness checking)."""
    B, H, W, C = moving_image.shape
    Hp, Wp = H + 2, W + 2
    im = jnp.pad(moving_image.astype(jnp.float32),
                 ((0, 0), (1, 1), (1, 1), (0, 0)))
    dx = deformation_matrix[..., 0].astype(jnp.float32)
    dy = deformation_matrix[..., 1].astype(jnp.float32)
    xm = jnp.broadcast_to(jnp.arange(W, dtype=jnp.float32)[None, :], (H, W))
    ym = jnp.broadcast_to(jnp.arange(H, dtype=jnp.float32)[:, None], (H, W))
    x = (dx + xm + 1.0).reshape(B, -1)
    y = (dy + ym + 1.0).reshape(B, -1)
    x0 = jnp.floor(x).astype(jnp.int32)
    x1 = x0 + 1
    y0 = jnp.floor(y).astype(jnp.int32)
    y1 = y0 + 1
    x0 = jnp.clip(x0, 0, Wp - 1)
    x1 = jnp.clip(x1, 0, Wp - 1)
    y0 = jnp.clip(y0, 0, Hp - 1)
    y1 = jnp.clip(y1, 0, Hp - 1)

    def gather(ix, iy):
        return jax.vmap(lambda imb, iyb, ixb: imb[iyb, ixb])(im, iy, ix)

    Ia = gather(x0, y0)
    Ib = gather(x0, y1)
    Ic = gather(x1, y0)
    Id = gather(x1, y1)
    dxw = x1.astype(jnp.float32) - x
    dyw = y1.astype(jnp.float32) - y
    wa = (dxw * dyw)[..., None]
    wb = (dxw * (1.0 - dyw))[..., None]
    wc = ((1.0 - dxw) * dyw)[..., None]
    wd = ((1.0 - dxw) * (1.0 - dyw))[..., None]
    out = wa * Ia + wb * Ib + wc * Ic + wd * Id
    return out.reshape(B, H, W, C)


if __name__ == "__main__":
    key = jax.random.PRNGKey(0)
    k_img, k_def, k_img2, k_def2 = jax.random.split(key, 4)

    # --- square case: exercises the default (row-major) layout --------------
    B, H, W, C = 2, 16, 16, 4
    img = jax.random.normal(k_img, (B, H, W, C), dtype=jnp.float32)
    # deformations of a few pixels (some land outside the image -> clamping)
    dmat = 2.5 * jax.random.normal(k_def, (B, H, W, 2), dtype=jnp.float32)
    ref = _reference(img, dmat)

    # exact path (f32 MXU operands)
    out_f32 = jax.block_until_ready(
        spatial_transformation(img, dmat, compute_dtype=jnp.float32))
    assert out_f32.shape == (B, H, W, C) and out_f32.dtype == jnp.float32
    assert jnp.allclose(out_f32, ref, atol=1e-4, rtol=1e-4), "f32 mismatch"

    # default fast path (bf16 MXU operands, f32 accumulation)
    out_bf = jax.block_until_ready(spatial_transformation(img, dmat))
    assert out_bf.shape == (B, H, W, C) and out_bf.dtype == jnp.float32
    assert jnp.allclose(out_bf, ref, atol=6e-2, rtol=6e-2), "bf16 mismatch"

    # --- non-square (W > H): exercises the transposed (larger-dim-on-MXU) path
    B2, H2, W2, C2 = 1, 8, 24, 3
    img2 = jax.random.normal(k_img2, (B2, H2, W2, C2), dtype=jnp.float32)
    dmat2 = 2.5 * jax.random.normal(k_def2, (B2, H2, W2, 2), dtype=jnp.float32)
    out2 = jax.block_until_ready(
        spatial_transformation(img2, dmat2, compute_dtype=jnp.float32))
    ref2 = _reference(img2, dmat2)
    assert out2.shape == (B2, H2, W2, C2)
    assert jnp.allclose(out2, ref2, atol=1e-4, rtol=1e-4), "transposed mismatch"

    print("KERNEL_OK")
</pallas_src>

<mosaic_0001>
module attributes {stable_mosaic.version = 11 : i64} {
  func.func @_spatial_transform_kernel(%arg0: i32, %arg1: i32, %arg2: memref<1x96x18xf32, #tpu.memory_space<vmem>>, %arg3: memref<1x2x256xf32, #tpu.memory_space<vmem>>, %arg4: memref<18x256xi32, #tpu.memory_space<vmem>>, %arg5: memref<24x256xi32, #tpu.memory_space<vmem>>, %arg6: memref<1x4x256xf32, #tpu.memory_space<vmem>>) attributes {dimension_semantics = [#tpu.dimension_semantics<parallel>, #tpu.dimension_semantics<parallel>], iteration_bounds = array<i64: 2, 1>, scalar_prefetch = 0 : i64, scratch_operands = 0 : i64, tpu.core_type = #tpu.core_type<tc>, window_params = [{pipeline_mode = #tpu.pipeline_mode<synchronous>, transform_indices = @transform_0, window_bounds = array<i64: 1, 96, 18>}, {transform_indices = @transform_1, window_bounds = array<i64: 1, 2, 256>}, {pipeline_mode = #tpu.pipeline_mode<synchronous>, transform_indices = @transform_2, window_bounds = array<i64: 18, 256>}, {pipeline_mode = #tpu.pipeline_mode<synchronous>, transform_indices = @transform_3, window_bounds = array<i64: 24, 256>}, {transform_indices = @transform_4, window_bounds = array<i64: 1, 4, 256>}]} {
    %c0 = arith.constant 0 : index
    %c0_0 = arith.constant 0 : index
    %c0_1 = arith.constant 0 : index
    %0 = vector.load %arg3[%c0, %c0_0, %c0_1] : memref<1x2x256xf32, #tpu.memory_space<vmem>>, vector<1x2x256xf32>
    %1 = vector.shape_cast %0 : vector<1x2x256xf32> to vector<2x256xf32>
    %2 = vector.extract_strided_slice %1 {offsets = [0, 0], sizes = [1, 256], strides = [1, 1]} : vector<2x256xf32> to vector<1x256xf32>
    %3 = vector.extract_strided_slice %1 {offsets = [1, 0], sizes = [1, 256], strides = [1, 1]} : vector<2x256xf32> to vector<1x256xf32>
    %4 = math.floor %2 : vector<1x256xf32>
    %5 = arith.fptosi %4 : vector<1x256xf32> to vector<1x256xi32>
    %6 = math.floor %3 : vector<1x256xf32>
    %7 = arith.fptosi %6 : vector<1x256xf32> to vector<1x256xi32>
    %c0_i32 = arith.constant 0 : i32
    %c17_i32 = arith.constant 17 : i32
    %8 = vector.broadcast %c0_i32 : i32 to vector<1x256xi32>
    %9 = arith.maxsi %8, %5 : vector<1x256xi32>
    %10 = vector.broadcast %c17_i32 : i32 to vector<1x256xi32>
    %11 = arith.minsi %10, %9 : vector<1x256xi32>
    %c1_i32 = arith.constant 1 : i32
    %12 = vector.broadcast %c1_i32 : i32 to vector<1x256xi32>
    %13 = arith.addi %5, %12 : vector<1x256xi32>
    %c0_i32_2 = arith.constant 0 : i32
    %c17_i32_3 = arith.constant 17 : i32
    %14 = vector.broadcast %c0_i32_2 : i32 to vector<1x256xi32>
    %15 = arith.maxsi %14, %13 : vector<1x256xi32>
    %16 = vector.broadcast %c17_i32_3 : i32 to vector<1x256xi32>
    %17 = arith.minsi %16, %15 : vector<1x256xi32>
    %c0_i32_4 = arith.constant 0 : i32
    %c17_i32_5 = arith.constant 17 : i32
    %18 = vector.broadcast %c0_i32_4 : i32 to vector<1x256xi32>
    %19 = arith.maxsi %18, %7 : vector<1x256xi32>
    %20 = vector.broadcast %c17_i32_5 : i32 to vector<1x256xi32>
    %21 = arith.minsi %20, %19 : vector<1x256xi32>
    %c1_i32_6 = arith.constant 1 : i32
    %22 = vector.broadcast %c1_i32_6 : i32 to vector<1x256xi32>
    %23 = arith.addi %7, %22 : vector<1x256xi32>
    %c0_i32_7 = arith.constant 0 : i32
    %c17_i32_8 = arith.constant 17 : i32
    %24 = vector.broadcast %c0_i32_7 : i32 to vector<1x256xi32>
    %25 = arith.maxsi %24, %23 : vector<1x256xi32>
    %26 = vector.broadcast %c17_i32_8 : i32 to vector<1x256xi32>
    %27 = arith.minsi %26, %25 : vector<1x256xi32>
    %28 = arith.sitofp %17 : vector<1x256xi32> to vector<1x256xf32>
    %29 = arith.subf %28, %2 : vector<1x256xf32>
    %30 = arith.sitofp %27 : vector<1x256xi32> to vector<1x256xf32>
    %31 = arith.subf %30, %3 : vector<1x256xf32>
    %cst = arith.constant 1.000000e+00 : f32
    %32 = vector.broadcast %cst : f32 to vector<1x256xf32>
    %33 = arith.subf %32, %29 : vector<1x256xf32>
    %cst_9 = arith.constant 1.000000e+00 : f32
    %34 = vector.broadcast %cst_9 : f32 to vector<1x256xf32>
    %35 = arith.subf %34, %31 : vector<1x256xf32>
    %c0_10 = arith.constant 0 : index
    %c0_11 = arith.constant 0 : index
    %36 = vector.load %arg4[%c0_10, %c0_11] : memref<18x256xi32, #tpu.memory_space<vmem>>, vector<18x256xi32>
    %37 = vector.broadcast %21 : vector<1x256xi32> to vector<18x256xi32>
    %38 = arith.cmpi eq, %36, %37 : vector<18x256xi32>
    %39 = arith.extui %38 : vector<18x256xi1> to vector<18x256xi32>
    %40 = arith.sitofp %39 : vector<18x256xi32> to vector<18x256xf32>
    %41 = vector.broadcast %31 : vector<1x256xf32> to vector<18x256xf32>
    %42 = arith.mulf %41, %40 : vector<18x256xf32>
    %43 = vector.broadcast %27 : vector<1x256xi32> to vector<18x256xi32>
    %44 = arith.cmpi eq, %36, %43 : vector<18x256xi32>
    %45 = arith.extui %44 : vector<18x256xi1> to vector<18x256xi32>
    %46 = arith.sitofp %45 : vector<18x256xi32> to vector<18x256xf32>
    %47 = vector.broadcast %35 : vector<1x256xf32> to vector<18x256xf32>
    %48 = arith.mulf %47, %46 : vector<18x256xf32>
    %49 = arith.addf %42, %48 : vector<18x256xf32>
    %c0_12 = arith.constant 0 : index
    %c0_13 = arith.constant 0 : index
    %c0_14 = arith.constant 0 : index
    %50 = vector.load %arg2[%c0_12, %c0_13, %c0_14] : memref<1x96x18xf32, #tpu.memory_space<vmem>>, vector<1x96x18xf32>
    %51 = vector.shape_cast %50 : vector<1x96x18xf32> to vector<96x18xf32>
    %cst_15 = arith.constant dense<0.000000e+00> : vector<96x256xf32>
    %52 = tpu.matmul %51, %49, %cst_15 {dimension_numbers = #tpu.dot_dimension_numbers<[1], [0], [0], [1], [0, 0, 1, 1], [], []>} : vector<96x18xf32>, vector<18x256xf32>, vector<96x256xf32> -> vector<96x256xf32>
    %c0_16 = arith.constant 0 : index
    %c0_17 = arith.constant 0 : index
    %53 = vector.load %arg5[%c0_16, %c0_17] : memref<24x256xi32, #tpu.memory_space<vmem>>, vector<24x256xi32>
    %54 = vector.broadcast %11 : vector<1x256xi32> to vector<24x256xi32>
    %55 = arith.cmpi eq, %53, %54 : vector<24x256xi32>
    %56 = arith.extui %55 : vector<24x256xi1> to vector<24x256xi32>
    %57 = arith.sitofp %56 : vector<24x256xi32> to vector<24x256xf32>
    %58 = vector.broadcast %29 : vector<1x256xf32> to vector<24x256xf32>
    %59 = arith.mulf %58, %57 : vector<24x256xf32>
    %60 = vector.broadcast %17 : vector<1x256xi32> to vector<24x256xi32>
    %61 = arith.cmpi eq, %53, %60 : vector<24x256xi32>
    %62 = arith.extui %61 : vector<24x256xi1> to vector<24x256xi32>
    %63 = arith.sitofp %62 : vector<24x256xi32> to vector<24x256xf32>
    %64 = vector.broadcast %33 : vector<1x256xf32> to vector<24x256xf32>
    %65 = arith.mulf %64, %63 : vector<24x256xf32>
    %66 = arith.addf %59, %65 : vector<24x256xf32>
    %67 = vector.shape_cast %52 : vector<96x256xf32> to vector<4x24x256xf32>
    %68 = vector.shape_cast %66 : vector<24x256xf32> to vector<1x24x256xf32>
    %69 = vector.broadcast %68 : vector<1x24x256xf32> to vector<4x24x256xf32>
    %70 = arith.mulf %69, %67 : vector<4x24x256xf32>
    %cst_18 = arith.constant dense<0.000000e+00> : vector<4x256xf32>
    %71 = vector.multi_reduction <add>, %70, %cst_18 [1] : vector<4x24x256xf32> to vector<4x256xf32>
    %c0_19 = arith.constant 0 : index
    %c0_20 = arith.constant 0 : index
    %c0_21 = arith.constant 0 : index
    %72 = vector.load %arg6[%c0_19, %c0_20, %c0_21] : memref<1x4x256xf32, #tpu.memory_space<vmem>>, vector<1x4x256xf32>
    %73 = vector.shape_cast %72 : vector<1x4x256xf32> to vector<4x256xf32>
    %74 = vector.shape_cast %71 : vector<4x256xf32> to vector<1x4x256xf32>
    tpu.vector_store %arg6[%c0_19, %c0_20, %c0_21], %74 {strides = array<i32>} : memref<1x4x256xf32, #tpu.memory_space<vmem>>, vector<1x4x256xf32>,
    return
  }
  func.func @transform_0(%arg0: i32, %arg1: i32) -> (i32, i32, i32) {
    %c0_i32 = arith.constant 0 : i32
    %c0_i32_0 = arith.constant 0 : i32
    %c0_i32_1 = arith.constant 0 : i32
    return %arg0, %c0_i32, %c0_i32_0 : i32, i32, i32
  }
  func.func @transform_1(%arg0: i32, %arg1: i32) -> (i32, i32, i32) {
    %c0_i32 = arith.constant 0 : i32
    %c0_i32_0 = arith.constant 0 : i32
    return %arg0, %c0_i32, %arg1 : i32, i32, i32
  }
  func.func @transform_2(%arg0: i32, %arg1: i32) -> (i32, i32) {
    %c0_i32 = arith.constant 0 : i32
    %c0_i32_0 = arith.constant 0 : i32
    %c0_i32_1 = arith.constant 0 : i32
    return %c0_i32, %c0_i32_0 : i32, i32
  }
  func.func @transform_3(%arg0: i32, %arg1: i32) -> (i32, i32) {
    %c0_i32 = arith.constant 0 : i32
    %c0_i32_0 = arith.constant 0 : i32
    %c0_i32_1 = arith.constant 0 : i32
    return %c0_i32, %c0_i32_0 : i32, i32
  }
  func.func @transform_4(%arg0: i32, %arg1: i32) -> (i32, i32, i32) {
    %c0_i32 = arith.constant 0 : i32
    %c0_i32_0 = arith.constant 0 : i32
    return %arg0, %c0_i32, %arg1 : i32, i32, i32
  }
}

module attributes {stable_mosaic.version = 11 : i64} {
  func.func @_spatial_transform_kernel(%arg0: i32, %arg1: i32, %arg2: memref<1x96x18xf32, #tpu.memory_space<vmem>>, %arg3: memref<1x2x256xf32, #tpu.memory_space<vmem>>, %arg4: memref<18x256xi32, #tpu.memory_space<vmem>>, %arg5: memref<24x256xi32, #tpu.memory_space<vmem>>, %arg6: memref<1x4x256xf32, #tpu.memory_space<vmem>>) attributes {dimension_semantics = [#tpu.dimension_semantics<parallel>, #tpu.dimension_semantics<parallel>], iteration_bounds = array<i64: 2, 1>, scalar_prefetch = 0 : i64, scratch_operands = 0 : i64, tpu.core_type = #tpu.core_type<tc>, window_params = [{transform_indices = @transform_0, window_bounds = array<i64: 1, 96, 18>}, {transform_indices = @transform_1, window_bounds = array<i64: 1, 2, 256>}, {pipeline_mode = #tpu.pipeline_mode<synchronous>, transform_indices = @transform_2, window_bounds = array<i64: 18, 256>}, {pipeline_mode = #tpu.pipeline_mode<synchronous>, transform_indices = @transform_3, window_bounds = array<i64: 24, 256>}, {transform_indices = @transform_4, window_bounds = array<i64: 1, 4, 256>}]} {
    %c0 = arith.constant 0 : index
    %c0_0 = arith.constant 0 : index
    %c0_1 = arith.constant 0 : index
    %0 = vector.load %arg3[%c0, %c0_0, %c0_1] : memref<1x2x256xf32, #tpu.memory_space<vmem>>, vector<1x2x256xf32>
    %1 = vector.shape_cast %0 : vector<1x2x256xf32> to vector<2x256xf32>
    %2 = vector.extract_strided_slice %1 {offsets = [0, 0], sizes = [1, 256], strides = [1, 1]} : vector<2x256xf32> to vector<1x256xf32>
    %3 = vector.extract_strided_slice %1 {offsets = [1, 0], sizes = [1, 256], strides = [1, 1]} : vector<2x256xf32> to vector<1x256xf32>
    %4 = math.floor %2 : vector<1x256xf32>
    %5 = arith.fptosi %4 : vector<1x256xf32> to vector<1x256xi32>
    %6 = math.floor %3 : vector<1x256xf32>
    %7 = arith.fptosi %6 : vector<1x256xf32> to vector<1x256xi32>
    %c0_i32 = arith.constant 0 : i32
    %c17_i32 = arith.constant 17 : i32
    %8 = vector.broadcast %c0_i32 : i32 to vector<1x256xi32>
    %9 = arith.maxsi %8, %5 : vector<1x256xi32>
    %10 = vector.broadcast %c17_i32 : i32 to vector<1x256xi32>
    %11 = arith.minsi %10, %9 : vector<1x256xi32>
    %c1_i32 = arith.constant 1 : i32
    %12 = vector.broadcast %c1_i32 : i32 to vector<1x256xi32>
    %13 = arith.addi %5, %12 : vector<1x256xi32>
    %c0_i32_2 = arith.constant 0 : i32
    %c17_i32_3 = arith.constant 17 : i32
    %14 = vector.broadcast %c0_i32_2 : i32 to vector<1x256xi32>
    %15 = arith.maxsi %14, %13 : vector<1x256xi32>
    %16 = vector.broadcast %c17_i32_3 : i32 to vector<1x256xi32>
    %17 = arith.minsi %16, %15 : vector<1x256xi32>
    %c0_i32_4 = arith.constant 0 : i32
    %c17_i32_5 = arith.constant 17 : i32
    %18 = vector.broadcast %c0_i32_4 : i32 to vector<1x256xi32>
    %19 = arith.maxsi %18, %7 : vector<1x256xi32>
    %20 = vector.broadcast %c17_i32_5 : i32 to vector<1x256xi32>
    %21 = arith.minsi %20, %19 : vector<1x256xi32>
    %c1_i32_6 = arith.constant 1 : i32
    %22 = vector.broadcast %c1_i32_6 : i32 to vector<1x256xi32>
    %23 = arith.addi %7, %22 : vector<1x256xi32>
    %c0_i32_7 = arith.constant 0 : i32
    %c17_i32_8 = arith.constant 17 : i32
    %24 = vector.broadcast %c0_i32_7 : i32 to vector<1x256xi32>
    %25 = arith.maxsi %24, %23 : vector<1x256xi32>
    %26 = vector.broadcast %c17_i32_8 : i32 to vector<1x256xi32>
    %27 = arith.minsi %26, %25 : vector<1x256xi32>
    %28 = arith.sitofp %17 : vector<1x256xi32> to vector<1x256xf32>
    %29 = arith.subf %28, %2 : vector<1x256xf32>
    %30 = arith.sitofp %27 : vector<1x256xi32> to vector<1x256xf32>
    %31 = arith.subf %30, %3 : vector<1x256xf32>
    %cst = arith.constant 1.000000e+00 : f32
    %32 = vector.broadcast %cst : f32 to vector<1x256xf32>
    %33 = arith.subf %32, %29 : vector<1x256xf32>
    %cst_9 = arith.constant 1.000000e+00 : f32
    %34 = vector.broadcast %cst_9 : f32 to vector<1x256xf32>
    %35 = arith.subf %34, %31 : vector<1x256xf32>
    %c0_10 = arith.constant 0 : index
    %c0_11 = arith.constant 0 : index
    %36 = vector.load %arg4[%c0_10, %c0_11] : memref<18x256xi32, #tpu.memory_space<vmem>>, vector<18x256xi32>
    %37 = vector.broadcast %21 : vector<1x256xi32> to vector<18x256xi32>
    %38 = arith.cmpi eq, %36, %37 : vector<18x256xi32>
    %39 = arith.extui %38 : vector<18x256xi1> to vector<18x256xi32>
    %40 = arith.sitofp %39 : vector<18x256xi32> to vector<18x256xf32>
    %41 = vector.broadcast %31 : vector<1x256xf32> to vector<18x256xf32>
    %42 = arith.mulf %41, %40 : vector<18x256xf32>
    %43 = vector.broadcast %27 : vector<1x256xi32> to vector<18x256xi32>
    %44 = arith.cmpi eq, %36, %43 : vector<18x256xi32>
    %45 = arith.extui %44 : vector<18x256xi1> to vector<18x256xi32>
    %46 = arith.sitofp %45 : vector<18x256xi32> to vector<18x256xf32>
    %47 = vector.broadcast %35 : vector<1x256xf32> to vector<18x256xf32>
    %48 = arith.mulf %47, %46 : vector<18x256xf32>
    %49 = arith.addf %42, %48 : vector<18x256xf32>
    %c0_12 = arith.constant 0 : index
    %c0_13 = arith.constant 0 : index
    %c0_14 = arith.constant 0 : index
    %50 = vector.load %arg2[%c0_12, %c0_13, %c0_14] : memref<1x96x18xf32, #tpu.memory_space<vmem>>, vector<1x96x18xf32>
    %51 = vector.shape_cast %50 : vector<1x96x18xf32> to vector<96x18xf32>
    %cst_15 = arith.constant dense<0.000000e+00> : vector<96x256xf32>
    %52 = tpu.matmul %51, %49, %cst_15 {dimension_numbers = #tpu.dot_dimension_numbers<[1], [0], [0], [1], [0, 0, 1, 1], [], []>} : vector<96x18xf32>, vector<18x256xf32>, vector<96x256xf32> -> vector<96x256xf32>
    %c0_16 = arith.constant 0 : index
    %c0_17 = arith.constant 0 : index
    %53 = vector.load %arg5[%c0_16, %c0_17] : memref<24x256xi32, #tpu.memory_space<vmem>>, vector<24x256xi32>
    %54 = vector.broadcast %11 : vector<1x256xi32> to vector<24x256xi32>
    %55 = arith.cmpi eq, %53, %54 : vector<24x256xi32>
    %56 = arith.extui %55 : vector<24x256xi1> to vector<24x256xi32>
    %57 = arith.sitofp %56 : vector<24x256xi32> to vector<24x256xf32>
    %58 = vector.broadcast %29 : vector<1x256xf32> to vector<24x256xf32>
    %59 = arith.mulf %58, %57 : vector<24x256xf32>
    %60 = vector.broadcast %17 : vector<1x256xi32> to vector<24x256xi32>
    %61 = arith.cmpi eq, %53, %60 : vector<24x256xi32>
    %62 = arith.extui %61 : vector<24x256xi1> to vector<24x256xi32>
    %63 = arith.sitofp %62 : vector<24x256xi32> to vector<24x256xf32>
    %64 = vector.broadcast %33 : vector<1x256xf32> to vector<24x256xf32>
    %65 = arith.mulf %64, %63 : vector<24x256xf32>
    %66 = arith.addf %59, %65 : vector<24x256xf32>
    %67 = vector.shape_cast %52 : vector<96x256xf32> to vector<4x24x256xf32>
    %68 = vector.shape_cast %66 : vector<24x256xf32> to vector<1x24x256xf32>
    %69 = vector.broadcast %68 : vector<1x24x256xf32> to vector<4x24x256xf32>
    %70 = arith.mulf %69, %67 : vector<4x24x256xf32>
    %cst_18 = arith.constant dense<0.000000e+00> : vector<4x256xf32>
    %71 = vector.multi_reduction <add>, %70, %cst_18 [1] : vector<4x24x256xf32> to vector<4x256xf32>
    %c0_19 = arith.constant 0 : index
    %c0_20 = arith.constant 0 : index
    %c0_21 = arith.constant 0 : index
    %72 = vector.load %arg6[%c0_19, %c0_20, %c0_21] : memref<1x4x256xf32, #tpu.memory_space<vmem>>, vector<1x4x256xf32>
    %73 = vector.shape_cast %72 : vector<1x4x256xf32> to vector<4x256xf32>
    %74 = vector.shape_cast %71 : vector<4x256xf32> to vector<1x4x256xf32>
    tpu.vector_store %arg6[%c0_19, %c0_20, %c0_21], %74 {strides = array<i32>} : memref<1x4x256xf32, #tpu.memory_space<vmem>>, vector<1x4x256xf32>,
    return
  }
  func.func @transform_0(%arg0: i32, %arg1: i32) -> (i32, i32, i32) {
    %c0_i32 = arith.constant 0 : i32
    %c0_i32_0 = arith.constant 0 : i32
    %c0_i32_1 = arith.constant 0 : i32
    return %arg0, %c0_i32, %c0_i32_0 : i32, i32, i32
  }
  func.func @transform_1(%arg0: i32, %arg1: i32) -> (i32, i32, i32) {
    %c0_i32 = arith.constant 0 : i32
    %c0_i32_0 = arith.constant 0 : i32
    return %arg0, %c0_i32, %arg1 : i32, i32, i32
  }
  func.func @transform_2(%arg0: i32, %arg1: i32) -> (i32, i32) {
    %c0_i32 = arith.constant 0 : i32
    %c0_i32_0 = arith.constant 0 : i32
    %c0_i32_1 = arith.constant 0 : i32
    return %c0_i32, %c0_i32_0 : i32, i32
  }
  func.func @transform_3(%arg0: i32, %arg1: i32) -> (i32, i32) {
    %c0_i32 = arith.constant 0 : i32
    %c0_i32_0 = arith.constant 0 : i32
    %c0_i32_1 = arith.constant 0 : i32
    return %c0_i32, %c0_i32_0 : i32, i32
  }
  func.func @transform_4(%arg0: i32, %arg1: i32) -> (i32, i32, i32) {
    %c0_i32 = arith.constant 0 : i32
    %c0_i32_0 = arith.constant 0 : i32
    return %arg0, %c0_i32, %arg1 : i32, i32, i32
  }
}

</mosaic_0001>

<llo_original>
// kernel: tpu_custom_call.1
$region0: #{tpu_custom_call.1}
  #allocation0 [shape = 'u32[]', space=smem, size = 0x4, offset = 0x4, fixed_abs, tag = 'smem constant byte address 0x4 - core index']
  #allocation1 [shape = 'u32[144,128]{1,0:T(1,128)}', space=vmem, size = 0x12000, scoped, tag = 'internal scratch']
  %s0 = inlined_call_operand.vmem [shape: f32[2,96,18], index: 0, kind: input, shape index: {}]
  %s1 = inlined_call_operand.vmem [shape: f32[2,2,256], index: 1, kind: input, shape index: {}]
  %s2 = inlined_call_operand.vmem [shape: s32[18,256], index: 2, kind: input, shape index: {}]
  %s3 = inlined_call_operand.vmem [shape: s32[24,256], index: 3, kind: input, shape index: {}]
  %s4 = inlined_call_operand.hbm [shape: f32[2,4,256], index: 4, kind: output, shape index: {}]
  %s5 = sld [smem:[#allocation0]]
  $region49: #{tpu_custom_call.1} parent=0
    _
  %s7 = ssub.s32 1, %s5
  %s8 = scalar_select 0, %s7, %s5
  $region1: #{tpu_custom_call.1} parent=0
    #allocation2 [shape = 'u8[8192]{0}', space=vmem, size = 0x2000, scoped, tag = 'output window, operand 0']
    #allocation3 [shape = 's32[2]{0}', space=sflag, size = 0x8, scoped, tag = 'scoped memory for tpu_custom_call.1']
    %9 = vsyncpa [#allocation3], 0
    %s10 = scalar_lea.sflag [#allocation3], 1
    %11 = vsyncpa %s10, 0
    loop: start=0, step=1, limit=4
    $region2: #{tpu_custom_call.1} parent=1 // loop_pre_header
      _
    $region3: #{tpu_custom_call.1} parent=1 // loop_header
      %s13 = sphi 0, %s17
      %p14 = scmp.ge.s32.totalorder %s13, 4
      %s20 = sphi 0, %s32
      %s21 = sphi 0, %s28
      %s22 = sphi 0, %s20
      %s23 = sphi 0, %s21
      %s24 = sphi 0, %s22
      %s25 = sphi 0, %s23
      %s35 = sphi 0, %s37
      %s38 = sphi 0, %s35
      %s39 = sphi 0, %s38
      %s55 = sphi 0, %s39
      %s63 = sphi 0, %s65
      %s66 = sphi 0, %s63
      %s67 = sphi 0, %s66
      %s83 = sphi 0, %s67
      %s87 = sphi 0, %s87
      %s89 = sphi 0, %s87
      %s90 = sphi 0, %s89
      %s104 = sphi 0, %s90
      %s108 = sphi 0, %s108
      %s110 = sphi 0, %s108
      %s111 = sphi 0, %s110
      %s125 = sphi 0, %s111
      %s133 = sphi 0, %s135
      %s136 = sphi 0, %s133
      %s137 = sphi 0, %s136
      %s153 = sphi 0, %s137
    $region4: #{tpu_custom_call.1} parent=1 // loop_header_branch
      %16 = sbr.rel (%p14) target = $region8
    $region5: #{tpu_custom_call.1} parent=1 // loop_body
      %s18 = ssub.s32 %s13, 1
      %s19 = ssub.s32 %s13, 2
      %s26 = sadd.s32 1, %s21
      %p27 = scmp.ge.s32.totalorder %s26, 1
      %s28 = scalar_select %p27, 0, %s26
      %s29 = sadd.s32 1, %s20
      %s30 = scalar_select %p27, %s29, %s20
      %p31 = scmp.ge.s32.totalorder %s30, 2
      %s32 = scalar_select %p31, 0, %s30
      %s33 = ssub.s32 %s20, %s32
      %p34 = scmp.eq.s32.totalorder %s33, 0
      %s36 = sadd.s32 %s35, 1
      %s37 = scalar_select %p34, %s35, %s36
      %p40 = pneg %p34
      %p41 = scmp.eq.s32.totalorder %s13, 1
      %p42 = por %p40, %p41
      %p43 = scmp.ne.s32.totalorder %s35, %s38
      %p44 = scmp.eq.s32.totalorder %s13, 0
      %p45 = por %p43, %p44
      %p46 = scmp.ne.s32.totalorder %s35, %s38
      %p47 = scmp.eq.s32.totalorder %s18, 1
      %p48 = por %p46, %p47
      %p49 = scmp.ne.s32.totalorder %s38, %s39
      %p50 = scmp.eq.s32.totalorder %s18, 0
      %p51 = por %p49, %p50
      %p52 = scmp.ne.s32.totalorder %s38, %s39
      %p53 = scmp.eq.s32.totalorder %s19, 1
      %p54 = por %p52, %p53
      %p56 = scmp.ne.s32.totalorder %s39, %s55
      %p57 = scmp.eq.s32.totalorder %s19, 0
      %p58 = por %p56, %p57
      %s59 = ssub.s32 %s20, %s32
      %s60 = ssub.s32 %s21, %s28
      %s61 = sor.u32 %s59, %s60
      %p62 = scmp.eq.s32.totalorder %s61, 0
      %s64 = sadd.s32 %s63, 1
      %s65 = scalar_select %p62, %s63, %s64
      %p68 = pneg %p62
      %p69 = scmp.eq.s32.totalorder %s13, 1
      %p70 = por %p68, %p69
      %p71 = scmp.ne.s32.totalorder %s63, %s66
      %p72 = scmp.eq.s32.totalorder %s13, 0
      %p73 = por %p71, %p72
      %p74 = scmp.ne.s32.totalorder %s63, %s66
      %p75 = scmp.eq.s32.totalorder %s18, 1
      %p76 = por %p74, %p75
      %p77 = scmp.ne.s32.totalorder %s66, %s67
      %p78 = scmp.eq.s32.totalorder %s18, 0
      %p79 = por %p77, %p78
      %p80 = scmp.ne.s32.totalorder %s66, %s67
      %p81 = scmp.eq.s32.totalorder %s19, 1
      %p82 = por %p80, %p81
      %p84 = scmp.ne.s32.totalorder %s67, %s83
      %p85 = scmp.eq.s32.totalorder %s19, 0
      %p86 = por %p84, %p85
      %s88 = sadd.s32 %s87, 1
      %p91 = scmp.eq.s32.totalorder %s13, 1
      %p92 = scmp.ne.s32.totalorder %s87, %s89
      %p93 = scmp.eq.s32.totalorder %s13, 0
      %p94 = por %p92, %p93
      %p95 = scmp.ne.s32.totalorder %s87, %s89
      %p96 = scmp.eq.s32.totalorder %s18, 1
      %p97 = por %p95, %p96
      %p98 = scmp.ne.s32.totalorder %s89, %s90
      %p99 = scmp.eq.s32.totalorder %s18, 0
      %p100 = por %p98, %p99
      %p101 = scmp.ne.s32.totalorder %s89, %s90
      %p102 = scmp.eq.s32.totalorder %s19, 1
      %p103 = por %p101, %p102
      %p105 = scmp.ne.s32.totalorder %s90, %s104
      %p106 = scmp.eq.s32.totalorder %s19, 0
      %p107 = por %p105, %p106
      %s109 = sadd.s32 %s108, 1
      %p112 = scmp.eq.s32.totalorder %s13, 1
      %p113 = scmp.ne.s32.totalorder %s108, %s110
      %p114 = scmp.eq.s32.totalorder %s13, 0
      %p115 = por %p113, %p114
      %p116 = scmp.ne.s32.totalorder %s108, %s110
      %p117 = scmp.eq.s32.totalorder %s18, 1
      %p118 = por %p116, %p117
      %p119 = scmp.ne.s32.totalorder %s110, %s111
      %p120 = scmp.eq.s32.totalorder %s18, 0
      %p121 = por %p119, %p120
      %p122 = scmp.ne.s32.totalorder %s110, %s111
      %p123 = scmp.eq.s32.totalorder %s19, 1
      %p124 = por %p122, %p123
      %p126 = scmp.ne.s32.totalorder %s111, %s125
      %p127 = scmp.eq.s32.totalorder %s19, 0
      %p128 = por %p126, %p127
      %s129 = ssub.s32 %s20, %s32
      %s130 = ssub.s32 %s21, %s28
      %s131 = sor.u32 %s129, %s130
      %p132 = scmp.eq.s32.totalorder %s131, 0
      %s134 = sadd.s32 %s133, 1
      %s135 = scalar_select %p132, %s133, %s134
      %p138 = pneg %p132
      %p139 = scmp.eq.s32.totalorder %s13, 1
      %p140 = por %p138, %p139
      %p141 = scmp.ne.s32.totalorder %s133, %s136
      %p142 = scmp.eq.s32.totalorder %s13, 0
      %p143 = por %p141, %p142
      %p144 = scmp.ne.s32.totalorder %s133, %s136
      %p145 = scmp.eq.s32.totalorder %s18, 1
      %p146 = por %p144, %p145
      %p147 = scmp.ne.s32.totalorder %s136, %s137
      %p148 = scmp.eq.s32.totalorder %s18, 0
      %p149 = por %p147, %p148
      %p150 = scmp.ne.s32.totalorder %s136, %s137
      %p151 = scmp.eq.s32.totalorder %s19, 1
      %p152 = por %p150, %p151
      %p154 = scmp.ne.s32.totalorder %s137, %s153
      %p155 = scmp.eq.s32.totalorder %s19, 0
      %p156 = por %p154, %p155
      %p157 = scmp.le.s32.totalorder 1, %s13
      %p158 = scmp.lt.s32.totalorder %s13, 3
      %p159 = pnand %p157, %p158
      %p160 = pneg %p159
      // Predicated region
      $region9: #{tpu_custom_call.1} parent=5 // pred_check
        _
      $region10: #{tpu_custom_call.1} parent=5 // pred_check_branch
        %162 = sbr.rel (%p159) target = $region12
      $region11: #{tpu_custom_call.1} parent=5 // pred_region
        %s163 = ssub.s32 %s13, 1
        // Predicated region
        $region13: #{tpu_custom_call.1} parent=11 // pred_check
          %p164 = pneg %p51
        $region14: #{tpu_custom_call.1} parent=11 // pred_check_branch
          %166 = sbr.rel (%p164) target = $region16
        $region15: #{tpu_custom_call.1} parent=11 // pred_region
          %p167 = scmp.lt.s32.totalorder %s22, 1
          %s168 = scalar_select %p167, %s22, 1
          %s169 = smul.addr %s168, 12
          %s170 = smul.addr %s169, 8
          %s171 = scalar_lea.vmem %s0, %s170
        $region16: #{tpu_custom_call.1} parent=11 // pred_fallthru
          _
        // Predicated region
        $region17: #{tpu_custom_call.1} parent=11 // pred_check
          %p172 = pneg %p100
        $region18: #{tpu_custom_call.1} parent=11 // pred_check_branch
          %174 = sbr.rel (%p172) target = $region20
        $region19: #{tpu_custom_call.1} parent=11 // pred_region
          _
        $region20: #{tpu_custom_call.1} parent=11 // pred_fallthru
          _
        // Predicated region
        $region21: #{tpu_custom_call.1} parent=11 // pred_check
          %p175 = pneg %p121
        $region22: #{tpu_custom_call.1} parent=11 // pred_check_branch
          %177 = sbr.rel (%p175) target = $region24
        $region23: #{tpu_custom_call.1} parent=11 // pred_region
          _
        $region24: #{tpu_custom_call.1} parent=11 // pred_fallthru
          _
      $region12: #{tpu_custom_call.1} parent=5 // pred_fallthru
        _
      %p178 = scmp.lt.s32.totalorder %s13, 2
      // Predicated region
      $region25: #{tpu_custom_call.1} parent=5 // pred_check
        %p179 = pneg %p178
      $region26: #{tpu_custom_call.1} parent=5 // pred_check_branch
        %181 = sbr.rel (%p179) target = $region28
      $region27: #{tpu_custom_call.1} parent=5 // pred_region
        // Predicated region
        $region29: #{tpu_custom_call.1} parent=27 // pred_check
          %p182 = pneg %p73
        $region30: #{tpu_custom_call.1} parent=27 // pred_check_branch
          %184 = sbr.rel (%p182) target = $region32
        $region31: #{tpu_custom_call.1} parent=27 // pred_region
          %s185 = smul.u32 2, %s21
          %p186 = scmp.lt.s32.totalorder %s20, 1
          %s187 = scalar_select %p186, %s20, 1
          %p188 = scmp.lt.s32.totalorder %s185, 1
          %s189 = scalar_select %p188, %s185, 1
          %s190 = smul.addr %s187, 2
          %s191 = sadd.s32 %s189, %s190
          %s192 = smul.addr %s191, 2
          %s193 = scalar_lea.vmem %s1, %s192
          %s194 = smul.u32 2, %s21
        $region32: #{tpu_custom_call.1} parent=27 // pred_fallthru
          _
      $region28: #{tpu_custom_call.1} parent=5 // pred_fallthru
        _
      %p195 = scmp.le.s32.totalorder 1, %s13
      %p196 = scmp.lt.s32.totalorder %s13, 3
      %p197 = pnand %p195, %p196
      %p198 = pneg %p197
      // Predicated region
      $region33: #{tpu_custom_call.1} parent=5 // pred_check
        _
      $region34: #{tpu_custom_call.1} parent=5 // pred_check_branch
        %200 = sbr.rel (%p197) target = $region36
      $region35: #{tpu_custom_call.1} parent=5 // pred_region
        %s201 = ssub.s32 %s13, 1
        %p202 = scmp.lt.s32.totalorder %s22, 1
        %s203 = scalar_select %p202, %s22, 1
        %s204 = smul.addr %s203, 12
        %s205 = smul.addr %s204, 8
        %s206 = scalar_lea.vmem %s0, %s205
        %p207 = pneg %p51
        %p208 = pneg %p48
        %s209 = smul.u32 2, %s23
        %p210 = scmp.lt.s32.totalorder %s22, 1
        %s211 = scalar_select %p210, %s22, 1
        %p212 = scmp.lt.s32.totalorder %s209, 1
        %s213 = scalar_select %p212, %s209, 1
        %s214 = smul.addr %s211, 2
        %s215 = sadd.s32 %s213, %s214
        %s216 = smul.addr %s215, 2
        %s217 = scalar_lea.vmem %s1, %s216
        %p218 = pneg %p79
        %p219 = pneg %p76
        %p220 = pneg %p100
        %p221 = pneg %p97
        %p222 = pneg %p121
        %p223 = pneg %p118
        %p224 = pneg %p149
        %p225 = pneg %p146
        %s226 = sand.u32 %s136, 1
        %s227 = scalar_lea.sflag [#allocation3], %s226
        %s228 = sand.u32 %s136, 1
        %s229 = smul.addr %s228, 8
        %s230 = scalar_lea.vmem [#allocation2], %s229
        %p231 = scmp.lt.s32.totalorder %s22, 1
        %s232 = scalar_select %p231, %s22, 1
        %s233 = smul.addr %s232, 12
        %s234 = smul.addr %s233, 8
        %s235 = scalar_lea.vmem %s0, %s234
        %s236 = smul.u32 2, %s23
        %p237 = scmp.lt.s32.totalorder %s22, 1
        %s238 = scalar_select %p237, %s22, 1
        %p239 = scmp.lt.s32.totalorder %s236, 1
        %s240 = scalar_select %p239, %s236, 1
        %s241 = smul.addr %s238, 2
        %s242 = sadd.s32 %s240, %s241
        %s243 = smul.addr %s242, 2
        %s244 = scalar_lea.vmem %s1, %s243
        %s245 = smul.u32 2, %s23
        %s246 = smul.u32 2, %s23
        %v247 = vld [vmem:[%s244] sm:$0xf]
        %v248 = vfloor.f32 %v247
        %v249 = vcvt.f32.s32.to.zero.pseudo %v248
        %vm250 = vcmp.gt.s32.totalorder %v249, 0
        %v251 = vsel %vm250, %v249, 0
        %vm252 = vcmp.lt.s32.totalorder %v251, 17
        %v253 = vsel %vm252, %v251, 17
        %v254 = vadd.s32 %v249, 1
        %vm255 = vcmp.gt.s32.totalorder %v254, 0
        %v256 = vsel %vm255, %v254, 0
        %vm257 = vcmp.lt.s32.totalorder %v256, 17
        %v258 = vsel %vm257, %v256, 17
        %v259 = vcvt.s32.f32 %v258
        %v260 = vsub.f32 %v259, %v247
        %v261 = vsub.f32 1.0, %v260
        %v262 = vld [vmem:[%s2] sm:$0xff]
        %v263 = vld [vmem:[%s2 + $0x8] sm:$0xff]
        %v264 = vld [vmem:[%s2 + $0x10] sm:$0xff]
        %v265 = vld [vmem:[%s2 + $0x18] sm:$0xff]
        %v266 = vld [vmem:[%s2 + $0x20] sm:$0x3]
        %v267 = vld [vmem:[%s2 + $0x28] sm:$0x3]
        %v268 = vlaneseq
        %v269 = vshrl.u32 %v268, 7
        %v270 = vsub.s32 1, %v269
        %v271 = vrot.slane %v253, %v270
        %v272 = vlaneseq
        %v273 = vshrl.u32 %v272, 7
        %v274 = vsub.s32 3, %v273
        %v275 = vrot.slane %v253, %v274
        %v276 = vlaneseq
        %v277 = vshrl.u32 %v276, 7
        %v278 = vsub.s32 1, %v277
        %v279 = vrot.slane %v271, %v278
        %v280 = vlaneseq
        %v281 = vshrl.u32 %v280, 7
        %v282 = vsub.s32 1, %v281
        %v283 = vrot.slane %v275, %v282
        %vm284 = vcmp.eq.s32.totalorder %v262, %v279
        %vm285 = vcmp.eq.s32.totalorder %v263, %v283
        %vm286 = vcmp.eq.s32.totalorder %v264, %v279
        %vm287 = vcmp.eq.s32.totalorder %v265, %v283
        %vm288 = vcmp.eq.s32.totalorder %v266, %v279
        %vm289 = vcmp.eq.s32.totalorder %v267, %v283
        %v290 = vsel %vm284, 1, 0
        %v291 = vsel %vm285, 1, 0
        %v292 = vsel %vm286, 1, 0
        %v293 = vsel %vm287, 1, 0
        %v294 = vsel %vm288, 1, 0
        %v295 = vsel %vm289, 1, 0
        %v296 = vcvt.s32.f32 %v290
        %v297 = vcvt.s32.f32 %v291
        %v298 = vcvt.s32.f32 %v292
        %v299 = vcvt.s32.f32 %v293
        %v300 = vcvt.s32.f32 %v294
        %v301 = vcvt.s32.f32 %v295
        %v303 = vlaneseq
        %v304 = vshrl.u32 %v303, 7
        %v305 = vsub.s32 1, %v304
        %v306 = vrot.slane %v260, %v305
        %v307 = vlaneseq
        %v308 = vshrl.u32 %v307, 7
        %v309 = vsub.s32 3, %v308
        %v310 = vrot.slane %v260, %v309
        %v313 = vlaneseq
        %v314 = vshrl.u32 %v313, 7
        %v315 = vsub.s32 1, %v314
        %v316 = vrot.slane %v306, %v315
        %v317 = vlaneseq
        %v318 = vshrl.u32 %v317, 7
        %v319 = vsub.s32 1, %v318
        %v320 = vrot.slane %v310, %v319
        %v321 = vmul.f32 %v316, %v296
        %v322 = vmul.f32 %v320, %v297
        %v323 = vmul.f32 %v316, %v298
        %v324 = vmul.f32 %v320, %v299
        %v325 = vmul.f32 %v316, %v300
        %v326 = vmul.f32 %v320, %v301
        %v327 = vlaneseq
        %v328 = vshrl.u32 %v327, 7
        %v329 = vsub.s32 1, %v328
        %v330 = vrot.slane %v258, %v329
        %v331 = vlaneseq
        %v332 = vshrl.u32 %v331, 7
        %v333 = vsub.s32 3, %v332
        %v334 = vrot.slane %v258, %v333
        %v335 = vlaneseq
        %v336 = vshrl.u32 %v335, 7
        %v337 = vsub.s32 1, %v336
        %v338 = vrot.slane %v330, %v337
        %v339 = vlaneseq
        %v340 = vshrl.u32 %v339, 7
        %v341 = vsub.s32 1, %v340
        %v342 = vrot.slane %v334, %v341
        %vm343 = vcmp.eq.s32.totalorder %v262, %v338
        %vm344 = vcmp.eq.s32.totalorder %v263, %v342
        %vm345 = vcmp.eq.s32.totalorder %v264, %v338
        %vm346 = vcmp.eq.s32.totalorder %v265, %v342
        %vm347 = vcmp.eq.s32.totalorder %v266, %v338
        %vm348 = vcmp.eq.s32.totalorder %v267, %v342
        %v349 = vsel %vm343, 1, 0
        %v350 = vsel %vm344, 1, 0
        %v351 = vsel %vm345, 1, 0
        %v352 = vsel %vm346, 1, 0
        %v353 = vsel %vm347, 1, 0
        %v354 = vsel %vm348, 1, 0
        %v355 = vcvt.s32.f32 %v349
        %v356 = vcvt.s32.f32 %v350
        %v357 = vcvt.s32.f32 %v351
        %v358 = vcvt.s32.f32 %v352
        %v359 = vcvt.s32.f32 %v353
        %v360 = vcvt.s32.f32 %v354
        %v362 = vlaneseq
        %v363 = vshrl.u32 %v362, 7
        %v364 = vsub.s32 1, %v363
        %v365 = vrot.slane %v261, %v364
        %v366 = vlaneseq
        %v367 = vshrl.u32 %v366, 7
        %v368 = vsub.s32 3, %v367
        %v369 = vrot.slane %v261, %v368
        %v372 = vlaneseq
        %v373 = vshrl.u32 %v372, 7
        %v374 = vsub.s32 1, %v373
        %v375 = vrot.slane %v365, %v374
        %v376 = vlaneseq
        %v377 = vshrl.u32 %v376, 7
        %v378 = vsub.s32 1, %v377
        %v379 = vrot.slane %v369, %v378
        %v380 = vmul.f32 %v375, %v355
        %v381 = vmul.f32 %v379, %v356
        %v382 = vmul.f32 %v375, %v357
        %v383 = vmul.f32 %v379, %v358
        %v384 = vmul.f32 %v375, %v359
        %v385 = vmul.f32 %v379, %v360
        %v386 = vadd.f32 %v321, %v380
        %v387 = vadd.f32 %v322, %v381
        %v388 = vadd.f32 %v323, %v382
        %v389 = vadd.f32 %v324, %v383
        %v390 = vadd.f32 %v325, %v384
        %v391 = vadd.f32 %v326, %v385
        %v392 = vld [vmem:[%s235] sm:$0xff]
        %v393 = vld [vmem:[%s235 + $0x8] sm:$0xff]
        %v394 = vld [vmem:[%s235 + $0x10] sm:$0xff]
        %v395 = vld [vmem:[%s235 + $0x18] sm:$0xff]
        %v396 = vld [vmem:[%s235 + $0x20] sm:$0xff]
        %v397 = vld [vmem:[%s235 + $0x28] sm:$0xff]
        %v398 = vld [vmem:[%s235 + $0x30] sm:$0xff]
        %v399 = vld [vmem:[%s235 + $0x38] sm:$0xff]
        %v400 = vld [vmem:[%s235 + $0x40] sm:$0xff]
        %v401 = vld [vmem:[%s235 + $0x48] sm:$0xff]
        %v402 = vld [vmem:[%s235 + $0x50] sm:$0xff]
        %v403 = vld [vmem:[%s235 + $0x58] sm:$0xff]
        %vm404 = vcmask 146432
        %v406 = vsel %vm404, %v392, 0
        %v409 = vsel %vm404, %v393, 0
        %v412 = vsel %vm404, %v394, 0
        %v415 = vsel %vm404, %v395, 0
        %v418 = vsel %vm404, %v396, 0
        %v421 = vsel %vm404, %v397, 0
        %v424 = vsel %vm404, %v398, 0
        %v427 = vsel %vm404, %v399, 0
        %v430 = vsel %vm404, %v400, 0
        %v433 = vsel %vm404, %v401, 0
        %v436 = vsel %vm404, %v402, 0
        %v439 = vsel %vm404, %v403, 0
        %vm441 = vcmask 1041408
        %v443 = vsel %vm441, %v390, 0
        %v446 = vsel %vm441, %v391, 0
        %448 = vmatprep.subr.mxu0 %v387
        %449 = vmatpush1.msra.mxu0 %v386
        %450 = vmatprep.subr.mxu0 %v389
        %451 = vmatpush1.msra.mxu0 %v388
        %452 = vmatprep.subr.mxu0 %v446
        %453 = vmatpush1.msra.mxu0 %v443
        %454 = vmatprep.subr.mxu0 0.0
        %455 = vmatpush1.msra.mxu0 0.0
        %456 = vmatprep.subr.mxu0 0.0
        %457 = vmatpush1.msra.mxu0 0.0
        %458 = vmatprep.subr.mxu0 0.0
        %459 = vmatpush1.msra.mxu0 0.0
        %460 = vmatprep.subr.mxu0 0.0
        %461 = vmatpush1.msra.mxu0 0.0
        %462 = vmatprep.subr.mxu0 0.0
        %463 = vmatpush1.msra.mxu0 0.0
        %464 = vmatprep.subr.mxu0 0.0
        %465 = vmatpush1.msra.mxu0 0.0
        %466 = vmatprep.subr.mxu0 0.0
        %467 = vmatpush1.msra.mxu0 0.0
        %468 = vmatprep.subr.mxu0 0.0
        %469 = vmatpush1.msra.mxu0 0.0
        %470 = vmatprep.subr.mxu0 0.0
        %471 = vmatpush1.msra.mxu0 0.0
        %472 = vmatprep.subr.mxu0 0.0
        %473 = vmatpush1.msra.mxu0 0.0
        %474 = vmatprep.subr.mxu0 0.0
        %475 = vmatpush1.msra.mxu0 0.0
        %476 = vmatprep.subr.mxu0 0.0
        %477 = vmatpush1.msra.mxu0 0.0
        %478 = vmatprep.subr.mxu0 0.0
        %479 = vmatpush1.msra.mxu0 0.0
        %480 = vmatprep.subr.mxu0 0.0
        %481 = vmatpush1.msra.mxu0 0.0
        %482 = vmatprep.subr.mxu0 0.0
        %483 = vmatpush1.msra.mxu0 0.0
        %484 = vmatprep.subr.mxu0 0.0
        %485 = vmatpush1.msra.mxu0 0.0
        %486 = vmatprep.subr.mxu0 0.0
        %487 = vmatpush1.msra.mxu0 0.0
        %488 = vmatprep.subr.mxu0 0.0
        %489 = vmatpush1.msra.mxu0 0.0
        %490 = vmatprep.subr.mxu0 0.0
        %491 = vmatpush1.msra.mxu0 0.0
        %492 = vmatprep.subr.mxu0 0.0
        %493 = vmatpush1.msra.mxu0 0.0
        %494 = vmatprep.subr.mxu0 0.0
        %495 = vmatpush1.msra.mxu0 0.0
        %496 = vmatprep.subr.mxu0 0.0
        %497 = vmatpush1.msra.mxu0 0.0
        %498 = vmatprep.subr.mxu0 0.0
        %499 = vmatpush1.msra.mxu0 0.0
        %500 = vmatprep.subr.mxu0 0.0
        %501 = vmatpush1.msra.mxu0 0.0
        %502 = vmatprep.subr.mxu0 0.0
        %503 = vmatpush1.msra.mxu0 0.0
        %504 = vmatprep.subr.mxu0 0.0
        %505 = vmatpush1.msra.mxu0 0.0
        %506 = vmatprep.subr.mxu0 0.0
        %507 = vmatpush1.msra.mxu0 0.0
        %508 = vmatprep.subr.mxu0 0.0
        %509 = vmatpush1.msra.mxu0 0.0
        %510 = vmatprep.subr.mxu0 0.0
        %511 = vmatpush1.msra.mxu0 0.0
        %512 = vmatprep.mubr.f32.mxu0 0.0
        %513 = vmatmul.mubr.f32.gmra.mrb[0].mxu0 %v406
        %v514 = vpop.f32.mrb[0].mxu0
        %v515 = vadd.f32 0.0, %v514
        %v516 = vpop.f32.mrb[0].mxu0
        %v517 = vadd.f32 0.0, %v516
        %518 = vmatprep.mubr.f32.mxu0 0.0
        %519 = vmatmul.mubr.f32.gmra.mrb[0].mxu0 %v409
        %v520 = vpop.f32.mrb[0].mxu0
        %v521 = vadd.f32 0.0, %v520
        %v522 = vpop.f32.mrb[0].mxu0
        %v523 = vadd.f32 0.0, %v522
        %524 = vmatprep.mubr.f32.mxu0 0.0
        %525 = vmatmul.mubr.f32.gmra.mrb[0].mxu0 %v412
        %v526 = vpop.f32.mrb[0].mxu0
        %v527 = vadd.f32 0.0, %v526
        %v528 = vpop.f32.mrb[0].mxu0
        %v529 = vadd.f32 0.0, %v528
        %530 = vmatprep.mubr.f32.mxu0 0.0
        %531 = vmatmul.mubr.f32.gmra.mrb[0].mxu0 %v415
        %v532 = vpop.f32.mrb[0].mxu0
        %v533 = vadd.f32 0.0, %v532
        %v534 = vpop.f32.mrb[0].mxu0
        %v535 = vadd.f32 0.0, %v534
        %536 = vmatprep.mubr.f32.mxu0 0.0
        %537 = vmatmul.mubr.f32.gmra.mrb[0].mxu0 %v418
        %v538 = vpop.f32.mrb[0].mxu0
        %v539 = vadd.f32 0.0, %v538
        %v540 = vpop.f32.mrb[0].mxu0
        %v541 = vadd.f32 0.0, %v540
        %542 = vmatprep.mubr.f32.mxu0 0.0
        %543 = vmatmul.mubr.f32.gmra.mrb[0].mxu0 %v421
        %v544 = vpop.f32.mrb[0].mxu0
        %v545 = vadd.f32 0.0, %v544
        %v546 = vpop.f32.mrb[0].mxu0
        %v547 = vadd.f32 0.0, %v546
        %548 = vmatprep.mubr.f32.mxu0 0.0
        %549 = vmatmul.mubr.f32.gmra.mrb[0].mxu0 %v424
        %v550 = vpop.f32.mrb[0].mxu0
        %v551 = vadd.f32 0.0, %v550
        %v552 = vpop.f32.mrb[0].mxu0
        %v553 = vadd.f32 0.0, %v552
        %554 = vmatprep.mubr.f32.mxu0 0.0
        %555 = vmatmul.mubr.f32.gmra.mrb[0].mxu0 %v427
        %v556 = vpop.f32.mrb[0].mxu0
        %v557 = vadd.f32 0.0, %v556
        %v558 = vpop.f32.mrb[0].mxu0
        %v559 = vadd.f32 0.0, %v558
        %560 = vmatprep.mubr.f32.mxu0 0.0
        %561 = vmatmul.mubr.f32.gmra.mrb[0].mxu0 %v430
        %v562 = vpop.f32.mrb[0].mxu0
        %v563 = vadd.f32 0.0, %v562
        %v564 = vpop.f32.mrb[0].mxu0
        %v565 = vadd.f32 0.0, %v564
        %566 = vmatprep.mubr.f32.mxu0 0.0
        %567 = vmatmul.mubr.f32.gmra.mrb[0].mxu0 %v433
        %v568 = vpop.f32.mrb[0].mxu0
        %v569 = vadd.f32 0.0, %v568
        %v570 = vpop.f32.mrb[0].mxu0
        %v571 = vadd.f32 0.0, %v570
        %572 = vmatprep.mubr.f32.mxu0 0.0
        %573 = vmatmul.mubr.f32.gmra.mrb[0].mxu0 %v436
        %v574 = vpop.f32.mrb[0].mxu0
        %v575 = vadd.f32 0.0, %v574
        %v576 = vpop.f32.mrb[0].mxu0
        %v577 = vadd.f32 0.0, %v576
        %578 = vmatprep.mubr.f32.mxu0 0.0
        %579 = vmatmul.mubr.f32.gmra.mrb[0].mxu0 %v439
        %v580 = vpop.f32.mrb[0].mxu0
        %v581 = vadd.f32 0.0, %v580
        %v582 = vpop.f32.mrb[0].mxu0
        %v583 = vadd.f32 0.0, %v582
        %584 = vdwg.mxu0
        %v585 = vld [vmem:[%s3] sm:$0xff]
        %v586 = vld [vmem:[%s3 + $0x8] sm:$0xff]
        %v587 = vld [vmem:[%s3 + $0x10] sm:$0xff]
        %v588 = vld [vmem:[%s3 + $0x18] sm:$0xff]
        %v589 = vld [vmem:[%s3 + $0x20] sm:$0xff]
        %v590 = vld [vmem:[%s3 + $0x28] sm:$0xff]
        %v591 = vlaneseq
        %v592 = vshrl.u32 %v591, 7
        %v593 = vsub.s32 0, %v592
        %v594 = vrot.slane %v253, %v593
        %v595 = vlaneseq
        %v596 = vshrl.u32 %v595, 7
        %v597 = vsub.s32 2, %v596
        %v598 = vrot.slane %v253, %v597
        %v599 = vlaneseq
        %v600 = vshrl.u32 %v599, 7
        %v601 = vsub.s32 0, %v600
        %v602 = vrot.slane %v594, %v601
        %v603 = vlaneseq
        %v604 = vshrl.u32 %v603, 7
        %v605 = vsub.s32 0, %v604
        %v606 = vrot.slane %v598, %v605
        %vm607 = vcmp.eq.s32.totalorder %v585, %v602
        %vm608 = vcmp.eq.s32.totalorder %v586, %v606
        %vm609 = vcmp.eq.s32.totalorder %v587, %v602
        %vm610 = vcmp.eq.s32.totalorder %v588, %v606
        %vm611 = vcmp.eq.s32.totalorder %v589, %v602
        %vm612 = vcmp.eq.s32.totalorder %v590, %v606
        %v613 = vsel %vm607, 1, 0
        %v614 = vsel %vm608, 1, 0
        %v615 = vsel %vm609, 1, 0
        %v616 = vsel %vm610, 1, 0
        %v617 = vsel %vm611, 1, 0
        %v618 = vsel %vm612, 1, 0
        %v619 = vcvt.s32.f32 %v613
        %v620 = vcvt.s32.f32 %v614
        %v621 = vcvt.s32.f32 %v615
        %v622 = vcvt.s32.f32 %v616
        %v623 = vcvt.s32.f32 %v617
        %v624 = vcvt.s32.f32 %v618
        %v625 = vlaneseq
        %v626 = vshrl.u32 %v625, 7
        %v627 = vsub.s32 0, %v626
        %v628 = vrot.slane %v260, %v627
        %v629 = vlaneseq
        %v630 = vshrl.u32 %v629, 7
        %v631 = vsub.s32 2, %v630
        %v632 = vrot.slane %v260, %v631
        %v635 = vlaneseq
        %v636 = vshrl.u32 %v635, 7
        %v637 = vsub.s32 0, %v636
        %v638 = vrot.slane %v628, %v637
        %v639 = vlaneseq
        %v640 = vshrl.u32 %v639, 7
        %v641 = vsub.s32 0, %v640
        %v642 = vrot.slane %v632, %v641
        %v643 = vmul.f32 %v638, %v619
        %v644 = vmul.f32 %v642, %v620
        %v645 = vmul.f32 %v638, %v621
        %v646 = vmul.f32 %v642, %v622
        %v647 = vmul.f32 %v638, %v623
        %v648 = vmul.f32 %v642, %v624
        %v649 = vlaneseq
        %v650 = vshrl.u32 %v649, 7
        %v651 = vsub.s32 0, %v650
        %v652 = vrot.slane %v258, %v651
        %v653 = vlaneseq
        %v654 = vshrl.u32 %v653, 7
        %v655 = vsub.s32 2, %v654
        %v656 = vrot.slane %v258, %v655
        %v657 = vlaneseq
        %v658 = vshrl.u32 %v657, 7
        %v659 = vsub.s32 0, %v658
        %v660 = vrot.slane %v652, %v659
        %v661 = vlaneseq
        %v662 = vshrl.u32 %v661, 7
        %v663 = vsub.s32 0, %v662
        %v664 = vrot.slane %v656, %v663
        %vm665 = vcmp.eq.s32.totalorder %v585, %v660
        %vm666 = vcmp.eq.s32.totalorder %v586, %v664
        %vm667 = vcmp.eq.s32.totalorder %v587, %v660
        %vm668 = vcmp.eq.s32.totalorder %v588, %v664
        %vm669 = vcmp.eq.s32.totalorder %v589, %v660
        %vm670 = vcmp.eq.s32.totalorder %v590, %v664
        %v671 = vsel %vm665, 1, 0
        %v672 = vsel %vm666, 1, 0
        %v673 = vsel %vm667, 1, 0
        %v674 = vsel %vm668, 1, 0
        %v675 = vsel %vm669, 1, 0
        %v676 = vsel %vm670, 1, 0
        %v677 = vcvt.s32.f32 %v671
        %v678 = vcvt.s32.f32 %v672
        %v679 = vcvt.s32.f32 %v673
        %v680 = vcvt.s32.f32 %v674
        %v681 = vcvt.s32.f32 %v675
        %v682 = vcvt.s32.f32 %v676
        %v683 = vlaneseq
        %v684 = vshrl.u32 %v683, 7
        %v685 = vsub.s32 0, %v684
        %v686 = vrot.slane %v261, %v685
        %v687 = vlaneseq
        %v688 = vshrl.u32 %v687, 7
        %v689 = vsub.s32 2, %v688
        %v690 = vrot.slane %v261, %v689
        %v693 = vlaneseq
        %v694 = vshrl.u32 %v693, 7
        %v695 = vsub.s32 0, %v694
        %v696 = vrot.slane %v686, %v695
        %v697 = vlaneseq
        %v698 = vshrl.u32 %v697, 7
        %v699 = vsub.s32 0, %v698
        %v700 = vrot.slane %v690, %v699
        %v701 = vmul.f32 %v696, %v677
        %v702 = vmul.f32 %v700, %v678
        %v703 = vmul.f32 %v696, %v679
        %v704 = vmul.f32 %v700, %v680
        %v705 = vmul.f32 %v696, %v681
        %v706 = vmul.f32 %v700, %v682
        %v707 = vadd.f32 %v643, %v701
        %v708 = vadd.f32 %v644, %v702
        %v709 = vadd.f32 %v645, %v703
        %v710 = vadd.f32 %v646, %v704
        %v711 = vadd.f32 %v647, %v705
        %v712 = vadd.f32 %v648, %v706
        %v713 = vmul.f32 %v707, %v515
        %v714 = vmul.f32 %v708, %v517
        %v715 = vmul.f32 %v709, %v521
        %v716 = vmul.f32 %v710, %v523
        %v717 = vmul.f32 %v711, %v527
        %v718 = vmul.f32 %v712, %v529
        %v719 = vmul.f32 %v707, %v533
        %v720 = vmul.f32 %v708, %v535
        %v721 = vmul.f32 %v709, %v539
        %v722 = vmul.f32 %v710, %v541
        %v723 = vmul.f32 %v711, %v545
        %v724 = vmul.f32 %v712, %v547
        %v725 = vmul.f32 %v707, %v551
        %v726 = vmul.f32 %v708, %v553
        %v727 = vmul.f32 %v709, %v557
        %v728 = vmul.f32 %v710, %v559
        %v729 = vmul.f32 %v711, %v563
        %v730 = vmul.f32 %v712, %v565
        %v731 = vmul.f32 %v707, %v569
        %v732 = vmul.f32 %v708, %v571
        %v733 = vmul.f32 %v709, %v575
        %v734 = vmul.f32 %v710, %v577
        %v735 = vmul.f32 %v711, %v581
        %v736 = vmul.f32 %v712, %v583
        %v737 = vadd.f32 %v713, %v715
        %v738 = vadd.f32 %v737, %v717
        %v739 = vrot.slane %v738, 4
        %v740 = vadd.f32 %v738, %v739
        %v741 = vrot.slane %v740, 2
        %v742 = vadd.f32 %v740, %v741
        %v743 = vrot.slane %v742, 1
        %v744 = vadd.f32 %v742, %v743
        %v745 = vadd.f32 %v714, %v716
        %v746 = vadd.f32 %v745, %v718
        %v747 = vrot.slane %v746, 4
        %v748 = vadd.f32 %v746, %v747
        %v749 = vrot.slane %v748, 2
        %v750 = vadd.f32 %v748, %v749
        %v751 = vrot.slane %v750, 1
        %v752 = vadd.f32 %v750, %v751
        %v753 = vadd.f32 %v719, %v721
        %v754 = vadd.f32 %v753, %v723
        %v755 = vrot.slane %v754, 4
        %v756 = vadd.f32 %v754, %v755
        %v757 = vrot.slane %v756, 2
        %v758 = vadd.f32 %v756, %v757
        %v759 = vrot.slane %v758, 1
        %v760 = vadd.f32 %v758, %v759
        %v761 = vadd.f32 %v720, %v722
        %v762 = vadd.f32 %v761, %v724
        %v763 = vrot.slane %v762, 4
        %v764 = vadd.f32 %v762, %v763
        %v765 = vrot.slane %v764, 2
        %v766 = vadd.f32 %v764, %v765
        %v767 = vrot.slane %v766, 1
        %v768 = vadd.f32 %v766, %v767
        %v769 = vadd.f32 %v725, %v727
        %v770 = vadd.f32 %v769, %v729
        %v771 = vrot.slane %v770, 4
        %v772 = vadd.f32 %v770, %v771
        %v773 = vrot.slane %v772, 2
        %v774 = vadd.f32 %v772, %v773
        %v775 = vrot.slane %v774, 1
        %v776 = vadd.f32 %v774, %v775
        %v777 = vadd.f32 %v726, %v728
        %v778 = vadd.f32 %v777, %v730
        %v779 = vrot.slane %v778, 4
        %v780 = vadd.f32 %v778, %v779
        %v781 = vrot.slane %v780, 2
        %v782 = vadd.f32 %v780, %v781
        %v783 = vrot.slane %v782, 1
        %v784 = vadd.f32 %v782, %v783
        %v785 = vadd.f32 %v731, %v733
        %v786 = vadd.f32 %v785, %v735
        %v787 = vrot.slane %v786, 4
        %v788 = vadd.f32 %v786, %v787
        %v789 = vrot.slane %v788, 2
        %v790 = vadd.f32 %v788, %v789
        %v791 = vrot.slane %v790, 1
        %v792 = vadd.f32 %v790, %v791
        %v793 = vadd.f32 %v732, %v734
        %v794 = vadd.f32 %v793, %v736
        %v795 = vrot.slane %v794, 4
        %v796 = vadd.f32 %v794, %v795
        %v797 = vrot.slane %v796, 2
        %v798 = vadd.f32 %v796, %v797
        %v799 = vrot.slane %v798, 1
        %v800 = vadd.f32 %v798, %v799
        %v809 = vcombine.low %v744, %v752
        %v810 = vcombine.low %v760, %v768
        %v811 = vcombine.low %v776, %v784
        %v812 = vcombine.low %v792, %v800
        %v813 = vrot.slane %v810, 7
        %vm814 = vcmask 1041409
        %v815 = vsel %vm814, %v813, %v809
        %vm816 = vcmask 1045509
        %v817 = vsel %vm816, %v813, %v815
        %v818 = vrot.slane %v811, 6
        %vm819 = vcmask 1042434
        %v820 = vsel %vm819, %v818, %v817
        %vm821 = vcmask 1046534
        %v822 = vsel %vm821, %v818, %v820
        %v823 = vrot.slane %v812, 5
        %vm824 = vcmask 1043459
        %v825 = vsel %vm824, %v823, %v822
        %vm826 = vcmask 1047559
        %v827 = vsel %vm826, %v823, %v825
        %829 = vst [vmem:[%s230] sm:$0xff] %v827
        %s830 = sand.u32 %s136, 1
        %s831 = scalar_lea.sflag [#allocation3], %s830
        %s832 = sand.u32 %s136, 1
        %s833 = smul.addr %s832, 8
        %s834 = scalar_lea.vmem [#allocation2], %s833
        // Predicated region
        $region37: #{tpu_custom_call.1} parent=35 // pred_check
          %p835 = pneg %p146
        $region38: #{tpu_custom_call.1} parent=35 // pred_check_branch
          %837 = sbr.rel (%p835) target = $region40
        $region39: #{tpu_custom_call.1} parent=35 // pred_region
          %s838 = smul.u32 2, %s23
          %s840 = ssub.s32 128, 128
          %841 = vsyncadd %s831, %s840
          %s842 = smul.addr %s22, 2
          %s843 = sadd.s32 %s838, %s842
          %s844 = smul.addr %s843, 64
          %s845 = scalar_lea.hbm %s4, %s844
          %s847 = sshll.u32 %s834, 4
          %s848 = int_to_ptr.vmem [resolvable:$true] %s847
          %850 = dma.vmem_to_hbm [thread:$0]  %s848, 128, %s845, %s831
        $region40: #{tpu_custom_call.1} parent=35 // pred_fallthru
          _
      $region36: #{tpu_custom_call.1} parent=5 // pred_fallthru
        _
      %p851 = scmp.le.s32.totalorder 2, %s13
      // Predicated region
      $region41: #{tpu_custom_call.1} parent=5 // pred_check
        %p852 = pneg %p851
      $region42: #{tpu_custom_call.1} parent=5 // pred_check_branch
        %854 = sbr.rel (%p852) target = $region44
      $region43: #{tpu_custom_call.1} parent=5 // pred_region
        %s855 = ssub.s32 %s13, 2
        // Predicated region
        $region45: #{tpu_custom_call.1} parent=43 // pred_check
          %p856 = pneg %p152
        $region46: #{tpu_custom_call.1} parent=43 // pred_check_branch
          %858 = sbr.rel (%p856) target = $region48
        $region47: #{tpu_custom_call.1} parent=43 // pred_region
          %s859 = sand.u32 %s137, 1
          %s860 = scalar_lea.sflag [#allocation3], %s859
          %s861 = sand.u32 %s137, 1
          %s862 = smul.addr %s861, 8
          %s863 = scalar_lea.vmem [#allocation2], %s862
          %864 = dma.done %s860, 128
        $region48: #{tpu_custom_call.1} parent=43 // pred_fallthru
          _
      $region44: #{tpu_custom_call.1} parent=5 // pred_fallthru
        _
    $region6: #{tpu_custom_call.1} parent=1 // loop_footer
      %s17 = sadd.s32 1, %s13
    $region7: #{tpu_custom_call.1} parent=1 // loop_footer_branch
      %12 = sbr.rel target = $region3
    $region8: #{tpu_custom_call.1} parent=1 // loop_exit
      _
    %865 = vsyncpa [#allocation3], 1
    %s866 = scalar_lea.sflag [#allocation3], 1
    %867 = vsyncpa %s866, 1

// kernel: tpu_custom_call.1
$region0: #{tpu_custom_call.1}
  #allocation0 [shape = 'u32[]', space=smem, size = 0x4, offset = 0x4, fixed_abs, tag = 'smem constant byte address 0x4 - core index']
  #allocation1 [shape = 'u32[144,128]{1,0:T(1,128)}', space=vmem, size = 0x12000, scoped, tag = 'internal scratch']
  %s0 = inlined_call_operand.vmem [shape: f32[2,96,18], index: 0, kind: input, shape index: {}]
  %s1 = inlined_call_operand.vmem [shape: f32[2,2,256], index: 1, kind: input, shape index: {}]
  %s2 = inlined_call_operand.vmem [shape: s32[18,256], index: 2, kind: input, shape index: {}]
  %s3 = inlined_call_operand.vmem [shape: s32[24,256], index: 3, kind: input, shape index: {}]
  %s4 = inlined_call_operand.hbm [shape: f32[2,4,256], index: 4, kind: output, shape index: {}]
  %s5 = sld [smem:[#allocation0]]
  $region49: #{tpu_custom_call.1} parent=0
    _
  %s7 = ssub.s32 1, %s5
  %s8 = scalar_select 0, %s7, %s5
  $region1: #{tpu_custom_call.1} parent=0
    #allocation2 [shape = 'u8[8192]{0}', space=vmem, size = 0x2000, scoped, tag = 'output window, operand 0']
    #allocation3 [shape = 's32[2]{0}', space=sflag, size = 0x8, scoped, tag = 'scoped memory for tpu_custom_call.1']
    %9 = vsyncpa [#allocation3], 0
    %s10 = scalar_lea.sflag [#allocation3], 1
    %11 = vsyncpa %s10, 0
    loop: start=0, step=1, limit=4
    $region2: #{tpu_custom_call.1} parent=1 // loop_pre_header
      _
    $region3: #{tpu_custom_call.1} parent=1 // loop_header
      %s13 = sphi 0, %s17
      %p14 = scmp.ge.s32.totalorder %s13, 4
      %s20 = sphi 0, %s32
      %s21 = sphi 0, %s28
      %s22 = sphi 0, %s20
      %s23 = sphi 0, %s21
      %s24 = sphi 0, %s22
      %s25 = sphi 0, %s23
      %s35 = sphi 0, %s37
      %s38 = sphi 0, %s35
      %s39 = sphi 0, %s38
      %s55 = sphi 0, %s39
      %s63 = sphi 0, %s65
      %s66 = sphi 0, %s63
      %s67 = sphi 0, %s66
      %s83 = sphi 0, %s67
      %s87 = sphi 0, %s87
      %s89 = sphi 0, %s87
      %s90 = sphi 0, %s89
      %s104 = sphi 0, %s90
      %s108 = sphi 0, %s108
      %s110 = sphi 0, %s108
      %s111 = sphi 0, %s110
      %s125 = sphi 0, %s111
      %s133 = sphi 0, %s135
      %s136 = sphi 0, %s133
      %s137 = sphi 0, %s136
      %s153 = sphi 0, %s137
    $region4: #{tpu_custom_call.1} parent=1 // loop_header_branch
      %16 = sbr.rel (%p14) target = $region8
    $region5: #{tpu_custom_call.1} parent=1 // loop_body
      %s18 = ssub.s32 %s13, 1
      %s19 = ssub.s32 %s13, 2
      %s26 = sadd.s32 1, %s21
      %p27 = scmp.ge.s32.totalorder %s26, 1
      %s28 = scalar_select %p27, 0, %s26
      %s29 = sadd.s32 1, %s20
      %s30 = scalar_select %p27, %s29, %s20
      %p31 = scmp.ge.s32.totalorder %s30, 2
      %s32 = scalar_select %p31, 0, %s30
      %s33 = ssub.s32 %s20, %s32
      %p34 = scmp.eq.s32.totalorder %s33, 0
      %s36 = sadd.s32 %s35, 1
      %s37 = scalar_select %p34, %s35, %s36
      %p40 = pneg %p34
      %p41 = scmp.eq.s32.totalorder %s13, 1
      %p42 = por %p40, %p41
      %p43 = scmp.ne.s32.totalorder %s35, %s38
      %p44 = scmp.eq.s32.totalorder %s13, 0
      %p45 = por %p43, %p44
      %p46 = scmp.ne.s32.totalorder %s35, %s38
      %p47 = scmp.eq.s32.totalorder %s18, 1
      %p48 = por %p46, %p47
      %p49 = scmp.ne.s32.totalorder %s38, %s39
      %p50 = scmp.eq.s32.totalorder %s18, 0
      %p51 = por %p49, %p50
      %p52 = scmp.ne.s32.totalorder %s38, %s39
      %p53 = scmp.eq.s32.totalorder %s19, 1
      %p54 = por %p52, %p53
      %p56 = scmp.ne.s32.totalorder %s39, %s55
      %p57 = scmp.eq.s32.totalorder %s19, 0
      %p58 = por %p56, %p57
      %s59 = ssub.s32 %s20, %s32
      %s60 = ssub.s32 %s21, %s28
      %s61 = sor.u32 %s59, %s60
      %p62 = scmp.eq.s32.totalorder %s61, 0
      %s64 = sadd.s32 %s63, 1
      %s65 = scalar_select %p62, %s63, %s64
      %p68 = pneg %p62
      %p69 = scmp.eq.s32.totalorder %s13, 1
      %p70 = por %p68, %p69
      %p71 = scmp.ne.s32.totalorder %s63, %s66
      %p72 = scmp.eq.s32.totalorder %s13, 0
      %p73 = por %p71, %p72
      %p74 = scmp.ne.s32.totalorder %s63, %s66
      %p75 = scmp.eq.s32.totalorder %s18, 1
      %p76 = por %p74, %p75
      %p77 = scmp.ne.s32.totalorder %s66, %s67
      %p78 = scmp.eq.s32.totalorder %s18, 0
      %p79 = por %p77, %p78
      %p80 = scmp.ne.s32.totalorder %s66, %s67
      %p81 = scmp.eq.s32.totalorder %s19, 1
      %p82 = por %p80, %p81
      %p84 = scmp.ne.s32.totalorder %s67, %s83
      %p85 = scmp.eq.s32.totalorder %s19, 0
      %p86 = por %p84, %p85
      %s88 = sadd.s32 %s87, 1
      %p91 = scmp.eq.s32.totalorder %s13, 1
      %p92 = scmp.ne.s32.totalorder %s87, %s89
      %p93 = scmp.eq.s32.totalorder %s13, 0
      %p94 = por %p92, %p93
      %p95 = scmp.ne.s32.totalorder %s87, %s89
      %p96 = scmp.eq.s32.totalorder %s18, 1
      %p97 = por %p95, %p96
      %p98 = scmp.ne.s32.totalorder %s89, %s90
      %p99 = scmp.eq.s32.totalorder %s18, 0
      %p100 = por %p98, %p99
      %p101 = scmp.ne.s32.totalorder %s89, %s90
      %p102 = scmp.eq.s32.totalorder %s19, 1
      %p103 = por %p101, %p102
      %p105 = scmp.ne.s32.totalorder %s90, %s104
      %p106 = scmp.eq.s32.totalorder %s19, 0
      %p107 = por %p105, %p106
      %s109 = sadd.s32 %s108, 1
      %p112 = scmp.eq.s32.totalorder %s13, 1
      %p113 = scmp.ne.s32.totalorder %s108, %s110
      %p114 = scmp.eq.s32.totalorder %s13, 0
      %p115 = por %p113, %p114
      %p116 = scmp.ne.s32.totalorder %s108, %s110
      %p117 = scmp.eq.s32.totalorder %s18, 1
      %p118 = por %p116, %p117
      %p119 = scmp.ne.s32.totalorder %s110, %s111
      %p120 = scmp.eq.s32.totalorder %s18, 0
      %p121 = por %p119, %p120
      %p122 = scmp.ne.s32.totalorder %s110, %s111
      %p123 = scmp.eq.s32.totalorder %s19, 1
      %p124 = por %p122, %p123
      %p126 = scmp.ne.s32.totalorder %s111, %s125
      %p127 = scmp.eq.s32.totalorder %s19, 0
      %p128 = por %p126, %p127
      %s129 = ssub.s32 %s20, %s32
      %s130 = ssub.s32 %s21, %s28
      %s131 = sor.u32 %s129, %s130
      %p132 = scmp.eq.s32.totalorder %s131, 0
      %s134 = sadd.s32 %s133, 1
      %s135 = scalar_select %p132, %s133, %s134
      %p138 = pneg %p132
      %p139 = scmp.eq.s32.totalorder %s13, 1
      %p140 = por %p138, %p139
      %p141 = scmp.ne.s32.totalorder %s133, %s136
      %p142 = scmp.eq.s32.totalorder %s13, 0
      %p143 = por %p141, %p142
      %p144 = scmp.ne.s32.totalorder %s133, %s136
      %p145 = scmp.eq.s32.totalorder %s18, 1
      %p146 = por %p144, %p145
      %p147 = scmp.ne.s32.totalorder %s136, %s137
      %p148 = scmp.eq.s32.totalorder %s18, 0
      %p149 = por %p147, %p148
      %p150 = scmp.ne.s32.totalorder %s136, %s137
      %p151 = scmp.eq.s32.totalorder %s19, 1
      %p152 = por %p150, %p151
      %p154 = scmp.ne.s32.totalorder %s137, %s153
      %p155 = scmp.eq.s32.totalorder %s19, 0
      %p156 = por %p154, %p155
      %p157 = scmp.le.s32.totalorder 1, %s13
      %p158 = scmp.lt.s32.totalorder %s13, 3
      %p159 = pnand %p157, %p158
      %p160 = pneg %p159
      // Predicated region
      $region9: #{tpu_custom_call.1} parent=5 // pred_check
        _
      $region10: #{tpu_custom_call.1} parent=5 // pred_check_branch
        %162 = sbr.rel (%p159) target = $region12
      $region11: #{tpu_custom_call.1} parent=5 // pred_region
        %s163 = ssub.s32 %s13, 1
        // Predicated region
        $region13: #{tpu_custom_call.1} parent=11 // pred_check
          %p164 = pneg %p100
        $region14: #{tpu_custom_call.1} parent=11 // pred_check_branch
          %166 = sbr.rel (%p164) target = $region16
        $region15: #{tpu_custom_call.1} parent=11 // pred_region
          _
        $region16: #{tpu_custom_call.1} parent=11 // pred_fallthru
          _
        // Predicated region
        $region17: #{tpu_custom_call.1} parent=11 // pred_check
          %p167 = pneg %p121
        $region18: #{tpu_custom_call.1} parent=11 // pred_check_branch
          %169 = sbr.rel (%p167) target = $region20
        $region19: #{tpu_custom_call.1} parent=11 // pred_region
          _
        $region20: #{tpu_custom_call.1} parent=11 // pred_fallthru
          _
      $region12: #{tpu_custom_call.1} parent=5 // pred_fallthru
        _
      %p170 = scmp.lt.s32.totalorder %s13, 2
      // Predicated region
      $region21: #{tpu_custom_call.1} parent=5 // pred_check
        %p171 = pneg %p170
      $region22: #{tpu_custom_call.1} parent=5 // pred_check_branch
        %173 = sbr.rel (%p171) target = $region24
      $region23: #{tpu_custom_call.1} parent=5 // pred_region
        // Predicated region
        $region25: #{tpu_custom_call.1} parent=23 // pred_check
          %p174 = pneg %p45
        $region26: #{tpu_custom_call.1} parent=23 // pred_check_branch
          %176 = sbr.rel (%p174) target = $region28
        $region27: #{tpu_custom_call.1} parent=23 // pred_region
          %p177 = scmp.lt.s32.totalorder %s20, 1
          %s178 = scalar_select %p177, %s20, 1
          %s179 = smul.addr %s178, 12
          %s180 = smul.addr %s179, 8
          %s181 = scalar_lea.vmem %s0, %s180
        $region28: #{tpu_custom_call.1} parent=23 // pred_fallthru
          _
        // Predicated region
        $region29: #{tpu_custom_call.1} parent=23 // pred_check
          %p182 = pneg %p73
        $region30: #{tpu_custom_call.1} parent=23 // pred_check_branch
          %184 = sbr.rel (%p182) target = $region32
        $region31: #{tpu_custom_call.1} parent=23 // pred_region
          %s185 = smul.u32 2, %s21
          %p186 = scmp.lt.s32.totalorder %s20, 1
          %s187 = scalar_select %p186, %s20, 1
          %p188 = scmp.lt.s32.totalorder %s185, 1
          %s189 = scalar_select %p188, %s185, 1
          %s190 = smul.addr %s187, 2
          %s191 = sadd.s32 %s189, %s190
          %s192 = smul.addr %s191, 2
          %s193 = scalar_lea.vmem %s1, %s192
          %s194 = smul.u32 2, %s21
        $region32: #{tpu_custom_call.1} parent=23 // pred_fallthru
          _
      $region24: #{tpu_custom_call.1} parent=5 // pred_fallthru
        _
      %p195 = scmp.le.s32.totalorder 1, %s13
      %p196 = scmp.lt.s32.totalorder %s13, 3
      %p197 = pnand %p195, %p196
      %p198 = pneg %p197
      // Predicated region
      $region33: #{tpu_custom_call.1} parent=5 // pred_check
        _
      $region34: #{tpu_custom_call.1} parent=5 // pred_check_branch
        %200 = sbr.rel (%p197) target = $region36
      $region35: #{tpu_custom_call.1} parent=5 // pred_region
        %s201 = ssub.s32 %s13, 1
        %p202 = scmp.lt.s32.totalorder %s22, 1
        %s203 = scalar_select %p202, %s22, 1
        %s204 = smul.addr %s203, 12
        %s205 = smul.addr %s204, 8
        %s206 = scalar_lea.vmem %s0, %s205
        %p207 = pneg %p51
        %p208 = pneg %p48
        %s209 = smul.u32 2, %s23
        %p210 = scmp.lt.s32.totalorder %s22, 1
        %s211 = scalar_select %p210, %s22, 1
        %p212 = scmp.lt.s32.totalorder %s209, 1
        %s213 = scalar_select %p212, %s209, 1
        %s214 = smul.addr %s211, 2
        %s215 = sadd.s32 %s213, %s214
        %s216 = smul.addr %s215, 2
        %s217 = scalar_lea.vmem %s1, %s216
        %p218 = pneg %p79
        %p219 = pneg %p76
        %p220 = pneg %p100
        %p221 = pneg %p97
        %p222 = pneg %p121
        %p223 = pneg %p118
        %p224 = pneg %p149
        %p225 = pneg %p146
        %s226 = sand.u32 %s136, 1
        %s227 = scalar_lea.sflag [#allocation3], %s226
        %s228 = sand.u32 %s136, 1
        %s229 = smul.addr %s228, 8
        %s230 = scalar_lea.vmem [#allocation2], %s229
        %p231 = scmp.lt.s32.totalorder %s22, 1
        %s232 = scalar_select %p231, %s22, 1
        %s233 = smul.addr %s232, 12
        %s234 = smul.addr %s233, 8
        %s235 = scalar_lea.vmem %s0, %s234
        %s236 = smul.u32 2, %s23
        %p237 = scmp.lt.s32.totalorder %s22, 1
        %s238 = scalar_select %p237, %s22, 1
        %p239 = scmp.lt.s32.totalorder %s236, 1
        %s240 = scalar_select %p239, %s236, 1
        %s241 = smul.addr %s238, 2
        %s242 = sadd.s32 %s240, %s241
        %s243 = smul.addr %s242, 2
        %s244 = scalar_lea.vmem %s1, %s243
        %s245 = smul.u32 2, %s23
        %s246 = smul.u32 2, %s23
        %v247 = vld [vmem:[%s244] sm:$0xf]
        %v248 = vfloor.f32 %v247
        %v249 = vcvt.f32.s32.to.zero.pseudo %v248
        %vm250 = vcmp.gt.s32.totalorder %v249, 0
        %v251 = vsel %vm250, %v249, 0
        %vm252 = vcmp.lt.s32.totalorder %v251, 17
        %v253 = vsel %vm252, %v251, 17
        %v254 = vadd.s32 %v249, 1
        %vm255 = vcmp.gt.s32.totalorder %v254, 0
        %v256 = vsel %vm255, %v254, 0
        %vm257 = vcmp.lt.s32.totalorder %v256, 17
        %v258 = vsel %vm257, %v256, 17
        %v259 = vcvt.s32.f32 %v258
        %v260 = vsub.f32 %v259, %v247
        %v261 = vsub.f32 1.0, %v260
        %v262 = vld [vmem:[%s2] sm:$0xff]
        %v263 = vld [vmem:[%s2 + $0x8] sm:$0xff]
        %v264 = vld [vmem:[%s2 + $0x10] sm:$0xff]
        %v265 = vld [vmem:[%s2 + $0x18] sm:$0xff]
        %v266 = vld [vmem:[%s2 + $0x20] sm:$0x3]
        %v267 = vld [vmem:[%s2 + $0x28] sm:$0x3]
        %v268 = vlaneseq
        %v269 = vshrl.u32 %v268, 7
        %v270 = vsub.s32 1, %v269
        %v271 = vrot.slane %v253, %v270
        %v272 = vlaneseq
        %v273 = vshrl.u32 %v272, 7
        %v274 = vsub.s32 3, %v273
        %v275 = vrot.slane %v253, %v274
        %v276 = vlaneseq
        %v277 = vshrl.u32 %v276, 7
        %v278 = vsub.s32 1, %v277
        %v279 = vrot.slane %v271, %v278
        %v280 = vlaneseq
        %v281 = vshrl.u32 %v280, 7
        %v282 = vsub.s32 1, %v281
        %v283 = vrot.slane %v275, %v282
        %vm284 = vcmp.eq.s32.totalorder %v262, %v279
        %vm285 = vcmp.eq.s32.totalorder %v263, %v283
        %vm286 = vcmp.eq.s32.totalorder %v264, %v279
        %vm287 = vcmp.eq.s32.totalorder %v265, %v283
        %vm288 = vcmp.eq.s32.totalorder %v266, %v279
        %vm289 = vcmp.eq.s32.totalorder %v267, %v283
        %v290 = vsel %vm284, 1, 0
        %v291 = vsel %vm285, 1, 0
        %v292 = vsel %vm286, 1, 0
        %v293 = vsel %vm287, 1, 0
        %v294 = vsel %vm288, 1, 0
        %v295 = vsel %vm289, 1, 0
        %v296 = vcvt.s32.f32 %v290
        %v297 = vcvt.s32.f32 %v291
        %v298 = vcvt.s32.f32 %v292
        %v299 = vcvt.s32.f32 %v293
        %v300 = vcvt.s32.f32 %v294
        %v301 = vcvt.s32.f32 %v295
        %v303 = vlaneseq
        %v304 = vshrl.u32 %v303, 7
        %v305 = vsub.s32 1, %v304
        %v306 = vrot.slane %v260, %v305
        %v307 = vlaneseq
        %v308 = vshrl.u32 %v307, 7
        %v309 = vsub.s32 3, %v308
        %v310 = vrot.slane %v260, %v309
        %v313 = vlaneseq
        %v314 = vshrl.u32 %v313, 7
        %v315 = vsub.s32 1, %v314
        %v316 = vrot.slane %v306, %v315
        %v317 = vlaneseq
        %v318 = vshrl.u32 %v317, 7
        %v319 = vsub.s32 1, %v318
        %v320 = vrot.slane %v310, %v319
        %v321 = vmul.f32 %v316, %v296
        %v322 = vmul.f32 %v320, %v297
        %v323 = vmul.f32 %v316, %v298
        %v324 = vmul.f32 %v320, %v299
        %v325 = vmul.f32 %v316, %v300
        %v326 = vmul.f32 %v320, %v301
        %v327 = vlaneseq
        %v328 = vshrl.u32 %v327, 7
        %v329 = vsub.s32 1, %v328
        %v330 = vrot.slane %v258, %v329
        %v331 = vlaneseq
        %v332 = vshrl.u32 %v331, 7
        %v333 = vsub.s32 3, %v332
        %v334 = vrot.slane %v258, %v333
        %v335 = vlaneseq
        %v336 = vshrl.u32 %v335, 7
        %v337 = vsub.s32 1, %v336
        %v338 = vrot.slane %v330, %v337
        %v339 = vlaneseq
        %v340 = vshrl.u32 %v339, 7
        %v341 = vsub.s32 1, %v340
        %v342 = vrot.slane %v334, %v341
        %vm343 = vcmp.eq.s32.totalorder %v262, %v338
        %vm344 = vcmp.eq.s32.totalorder %v263, %v342
        %vm345 = vcmp.eq.s32.totalorder %v264, %v338
        %vm346 = vcmp.eq.s32.totalorder %v265, %v342
        %vm347 = vcmp.eq.s32.totalorder %v266, %v338
        %vm348 = vcmp.eq.s32.totalorder %v267, %v342
        %v349 = vsel %vm343, 1, 0
        %v350 = vsel %vm344, 1, 0
        %v351 = vsel %vm345, 1, 0
        %v352 = vsel %vm346, 1, 0
        %v353 = vsel %vm347, 1, 0
        %v354 = vsel %vm348, 1, 0
        %v355 = vcvt.s32.f32 %v349
        %v356 = vcvt.s32.f32 %v350
        %v357 = vcvt.s32.f32 %v351
        %v358 = vcvt.s32.f32 %v352
        %v359 = vcvt.s32.f32 %v353
        %v360 = vcvt.s32.f32 %v354
        %v362 = vlaneseq
        %v363 = vshrl.u32 %v362, 7
        %v364 = vsub.s32 1, %v363
        %v365 = vrot.slane %v261, %v364
        %v366 = vlaneseq
        %v367 = vshrl.u32 %v366, 7
        %v368 = vsub.s32 3, %v367
        %v369 = vrot.slane %v261, %v368
        %v372 = vlaneseq
        %v373 = vshrl.u32 %v372, 7
        %v374 = vsub.s32 1, %v373
        %v375 = vrot.slane %v365, %v374
        %v376 = vlaneseq
        %v377 = vshrl.u32 %v376, 7
        %v378 = vsub.s32 1, %v377
        %v379 = vrot.slane %v369, %v378
        %v380 = vmul.f32 %v375, %v355
        %v381 = vmul.f32 %v379, %v356
        %v382 = vmul.f32 %v375, %v357
        %v383 = vmul.f32 %v379, %v358
        %v384 = vmul.f32 %v375, %v359
        %v385 = vmul.f32 %v379, %v360
        %v386 = vadd.f32 %v321, %v380
        %v387 = vadd.f32 %v322, %v381
        %v388 = vadd.f32 %v323, %v382
        %v389 = vadd.f32 %v324, %v383
        %v390 = vadd.f32 %v325, %v384
        %v391 = vadd.f32 %v326, %v385
        %v392 = vld [vmem:[%s235] sm:$0xff]
        %v393 = vld [vmem:[%s235 + $0x8] sm:$0xff]
        %v394 = vld [vmem:[%s235 + $0x10] sm:$0xff]
        %v395 = vld [vmem:[%s235 + $0x18] sm:$0xff]
        %v396 = vld [vmem:[%s235 + $0x20] sm:$0xff]
        %v397 = vld [vmem:[%s235 + $0x28] sm:$0xff]
        %v398 = vld [vmem:[%s235 + $0x30] sm:$0xff]
        %v399 = vld [vmem:[%s235 + $0x38] sm:$0xff]
        %v400 = vld [vmem:[%s235 + $0x40] sm:$0xff]
        %v401 = vld [vmem:[%s235 + $0x48] sm:$0xff]
        %v402 = vld [vmem:[%s235 + $0x50] sm:$0xff]
        %v403 = vld [vmem:[%s235 + $0x58] sm:$0xff]
        %vm404 = vcmask 146432
        %v406 = vsel %vm404, %v392, 0
        %v409 = vsel %vm404, %v393, 0
        %v412 = vsel %vm404, %v394, 0
        %v415 = vsel %vm404, %v395, 0
        %v418 = vsel %vm404, %v396, 0
        %v421 = vsel %vm404, %v397, 0
        %v424 = vsel %vm404, %v398, 0
        %v427 = vsel %vm404, %v399, 0
        %v430 = vsel %vm404, %v400, 0
        %v433 = vsel %vm404, %v401, 0
        %v436 = vsel %vm404, %v402, 0
        %v439 = vsel %vm404, %v403, 0
        %vm441 = vcmask 1041408
        %v443 = vsel %vm441, %v390, 0
        %v446 = vsel %vm441, %v391, 0
        %448 = vmatprep.subr.mxu0 %v387
        %449 = vmatpush1.msra.mxu0 %v386
        %450 = vmatprep.subr.mxu0 %v389
        %451 = vmatpush1.msra.mxu0 %v388
        %452 = vmatprep.subr.mxu0 %v446
        %453 = vmatpush1.msra.mxu0 %v443
        %454 = vmatprep.subr.mxu0 0.0
        %455 = vmatpush1.msra.mxu0 0.0
        %456 = vmatprep.subr.mxu0 0.0
        %457 = vmatpush1.msra.mxu0 0.0
        %458 = vmatprep.subr.mxu0 0.0
        %459 = vmatpush1.msra.mxu0 0.0
        %460 = vmatprep.subr.mxu0 0.0
        %461 = vmatpush1.msra.mxu0 0.0
        %462 = vmatprep.subr.mxu0 0.0
        %463 = vmatpush1.msra.mxu0 0.0
        %464 = vmatprep.subr.mxu0 0.0
        %465 = vmatpush1.msra.mxu0 0.0
        %466 = vmatprep.subr.mxu0 0.0
        %467 = vmatpush1.msra.mxu0 0.0
        %468 = vmatprep.subr.mxu0 0.0
        %469 = vmatpush1.msra.mxu0 0.0
        %470 = vmatprep.subr.mxu0 0.0
        %471 = vmatpush1.msra.mxu0 0.0
        %472 = vmatprep.subr.mxu0 0.0
        %473 = vmatpush1.msra.mxu0 0.0
        %474 = vmatprep.subr.mxu0 0.0
        %475 = vmatpush1.msra.mxu0 0.0
        %476 = vmatprep.subr.mxu0 0.0
        %477 = vmatpush1.msra.mxu0 0.0
        %478 = vmatprep.subr.mxu0 0.0
        %479 = vmatpush1.msra.mxu0 0.0
        %480 = vmatprep.subr.mxu0 0.0
        %481 = vmatpush1.msra.mxu0 0.0
        %482 = vmatprep.subr.mxu0 0.0
        %483 = vmatpush1.msra.mxu0 0.0
        %484 = vmatprep.subr.mxu0 0.0
        %485 = vmatpush1.msra.mxu0 0.0
        %486 = vmatprep.subr.mxu0 0.0
        %487 = vmatpush1.msra.mxu0 0.0
        %488 = vmatprep.subr.mxu0 0.0
        %489 = vmatpush1.msra.mxu0 0.0
        %490 = vmatprep.subr.mxu0 0.0
        %491 = vmatpush1.msra.mxu0 0.0
        %492 = vmatprep.subr.mxu0 0.0
        %493 = vmatpush1.msra.mxu0 0.0
        %494 = vmatprep.subr.mxu0 0.0
        %495 = vmatpush1.msra.mxu0 0.0
        %496 = vmatprep.subr.mxu0 0.0
        %497 = vmatpush1.msra.mxu0 0.0
        %498 = vmatprep.subr.mxu0 0.0
        %499 = vmatpush1.msra.mxu0 0.0
        %500 = vmatprep.subr.mxu0 0.0
        %501 = vmatpush1.msra.mxu0 0.0
        %502 = vmatprep.subr.mxu0 0.0
        %503 = vmatpush1.msra.mxu0 0.0
        %504 = vmatprep.subr.mxu0 0.0
        %505 = vmatpush1.msra.mxu0 0.0
        %506 = vmatprep.subr.mxu0 0.0
        %507 = vmatpush1.msra.mxu0 0.0
        %508 = vmatprep.subr.mxu0 0.0
        %509 = vmatpush1.msra.mxu0 0.0
        %510 = vmatprep.subr.mxu0 0.0
        %511 = vmatpush1.msra.mxu0 0.0
        %512 = vmatprep.mubr.f32.mxu0 0.0
        %513 = vmatmul.mubr.f32.gmra.mrb[0].mxu0 %v406
        %v514 = vpop.f32.mrb[0].mxu0
        %v515 = vadd.f32 0.0, %v514
        %v516 = vpop.f32.mrb[0].mxu0
        %v517 = vadd.f32 0.0, %v516
        %518 = vmatprep.mubr.f32.mxu0 0.0
        %519 = vmatmul.mubr.f32.gmra.mrb[0].mxu0 %v409
        %v520 = vpop.f32.mrb[0].mxu0
        %v521 = vadd.f32 0.0, %v520
        %v522 = vpop.f32.mrb[0].mxu0
        %v523 = vadd.f32 0.0, %v522
        %524 = vmatprep.mubr.f32.mxu0 0.0
        %525 = vmatmul.mubr.f32.gmra.mrb[0].mxu0 %v412
        %v526 = vpop.f32.mrb[0].mxu0
        %v527 = vadd.f32 0.0, %v526
        %v528 = vpop.f32.mrb[0].mxu0
        %v529 = vadd.f32 0.0, %v528
        %530 = vmatprep.mubr.f32.mxu0 0.0
        %531 = vmatmul.mubr.f32.gmra.mrb[0].mxu0 %v415
        %v532 = vpop.f32.mrb[0].mxu0
        %v533 = vadd.f32 0.0, %v532
        %v534 = vpop.f32.mrb[0].mxu0
        %v535 = vadd.f32 0.0, %v534
        %536 = vmatprep.mubr.f32.mxu0 0.0
        %537 = vmatmul.mubr.f32.gmra.mrb[0].mxu0 %v418
        %v538 = vpop.f32.mrb[0].mxu0
        %v539 = vadd.f32 0.0, %v538
        %v540 = vpop.f32.mrb[0].mxu0
        %v541 = vadd.f32 0.0, %v540
        %542 = vmatprep.mubr.f32.mxu0 0.0
        %543 = vmatmul.mubr.f32.gmra.mrb[0].mxu0 %v421
        %v544 = vpop.f32.mrb[0].mxu0
        %v545 = vadd.f32 0.0, %v544
        %v546 = vpop.f32.mrb[0].mxu0
        %v547 = vadd.f32 0.0, %v546
        %548 = vmatprep.mubr.f32.mxu0 0.0
        %549 = vmatmul.mubr.f32.gmra.mrb[0].mxu0 %v424
        %v550 = vpop.f32.mrb[0].mxu0
        %v551 = vadd.f32 0.0, %v550
        %v552 = vpop.f32.mrb[0].mxu0
        %v553 = vadd.f32 0.0, %v552
        %554 = vmatprep.mubr.f32.mxu0 0.0
        %555 = vmatmul.mubr.f32.gmra.mrb[0].mxu0 %v427
        %v556 = vpop.f32.mrb[0].mxu0
        %v557 = vadd.f32 0.0, %v556
        %v558 = vpop.f32.mrb[0].mxu0
        %v559 = vadd.f32 0.0, %v558
        %560 = vmatprep.mubr.f32.mxu0 0.0
        %561 = vmatmul.mubr.f32.gmra.mrb[0].mxu0 %v430
        %v562 = vpop.f32.mrb[0].mxu0
        %v563 = vadd.f32 0.0, %v562
        %v564 = vpop.f32.mrb[0].mxu0
        %v565 = vadd.f32 0.0, %v564
        %566 = vmatprep.mubr.f32.mxu0 0.0
        %567 = vmatmul.mubr.f32.gmra.mrb[0].mxu0 %v433
        %v568 = vpop.f32.mrb[0].mxu0
        %v569 = vadd.f32 0.0, %v568
        %v570 = vpop.f32.mrb[0].mxu0
        %v571 = vadd.f32 0.0, %v570
        %572 = vmatprep.mubr.f32.mxu0 0.0
        %573 = vmatmul.mubr.f32.gmra.mrb[0].mxu0 %v436
        %v574 = vpop.f32.mrb[0].mxu0
        %v575 = vadd.f32 0.0, %v574
        %v576 = vpop.f32.mrb[0].mxu0
        %v577 = vadd.f32 0.0, %v576
        %578 = vmatprep.mubr.f32.mxu0 0.0
        %579 = vmatmul.mubr.f32.gmra.mrb[0].mxu0 %v439
        %v580 = vpop.f32.mrb[0].mxu0
        %v581 = vadd.f32 0.0, %v580
        %v582 = vpop.f32.mrb[0].mxu0
        %v583 = vadd.f32 0.0, %v582
        %584 = vdwg.mxu0
        %v585 = vld [vmem:[%s3] sm:$0xff]
        %v586 = vld [vmem:[%s3 + $0x8] sm:$0xff]
        %v587 = vld [vmem:[%s3 + $0x10] sm:$0xff]
        %v588 = vld [vmem:[%s3 + $0x18] sm:$0xff]
        %v589 = vld [vmem:[%s3 + $0x20] sm:$0xff]
        %v590 = vld [vmem:[%s3 + $0x28] sm:$0xff]
        %v591 = vlaneseq
        %v592 = vshrl.u32 %v591, 7
        %v593 = vsub.s32 0, %v592
        %v594 = vrot.slane %v253, %v593
        %v595 = vlaneseq
        %v596 = vshrl.u32 %v595, 7
        %v597 = vsub.s32 2, %v596
        %v598 = vrot.slane %v253, %v597
        %v599 = vlaneseq
        %v600 = vshrl.u32 %v599, 7
        %v601 = vsub.s32 0, %v600
        %v602 = vrot.slane %v594, %v601
        %v603 = vlaneseq
        %v604 = vshrl.u32 %v603, 7
        %v605 = vsub.s32 0, %v604
        %v606 = vrot.slane %v598, %v605
        %vm607 = vcmp.eq.s32.totalorder %v585, %v602
        %vm608 = vcmp.eq.s32.totalorder %v586, %v606
        %vm609 = vcmp.eq.s32.totalorder %v587, %v602
        %vm610 = vcmp.eq.s32.totalorder %v588, %v606
        %vm611 = vcmp.eq.s32.totalorder %v589, %v602
        %vm612 = vcmp.eq.s32.totalorder %v590, %v606
        %v613 = vsel %vm607, 1, 0
        %v614 = vsel %vm608, 1, 0
        %v615 = vsel %vm609, 1, 0
        %v616 = vsel %vm610, 1, 0
        %v617 = vsel %vm611, 1, 0
        %v618 = vsel %vm612, 1, 0
        %v619 = vcvt.s32.f32 %v613
        %v620 = vcvt.s32.f32 %v614
        %v621 = vcvt.s32.f32 %v615
        %v622 = vcvt.s32.f32 %v616
        %v623 = vcvt.s32.f32 %v617
        %v624 = vcvt.s32.f32 %v618
        %v625 = vlaneseq
        %v626 = vshrl.u32 %v625, 7
        %v627 = vsub.s32 0, %v626
        %v628 = vrot.slane %v260, %v627
        %v629 = vlaneseq
        %v630 = vshrl.u32 %v629, 7
        %v631 = vsub.s32 2, %v630
        %v632 = vrot.slane %v260, %v631
        %v635 = vlaneseq
        %v636 = vshrl.u32 %v635, 7
        %v637 = vsub.s32 0, %v636
        %v638 = vrot.slane %v628, %v637
        %v639 = vlaneseq
        %v640 = vshrl.u32 %v639, 7
        %v641 = vsub.s32 0, %v640
        %v642 = vrot.slane %v632, %v641
        %v643 = vmul.f32 %v638, %v619
        %v644 = vmul.f32 %v642, %v620
        %v645 = vmul.f32 %v638, %v621
        %v646 = vmul.f32 %v642, %v622
        %v647 = vmul.f32 %v638, %v623
        %v648 = vmul.f32 %v642, %v624
        %v649 = vlaneseq
        %v650 = vshrl.u32 %v649, 7
        %v651 = vsub.s32 0, %v650
        %v652 = vrot.slane %v258, %v651
        %v653 = vlaneseq
        %v654 = vshrl.u32 %v653, 7
        %v655 = vsub.s32 2, %v654
        %v656 = vrot.slane %v258, %v655
        %v657 = vlaneseq
        %v658 = vshrl.u32 %v657, 7
        %v659 = vsub.s32 0, %v658
        %v660 = vrot.slane %v652, %v659
        %v661 = vlaneseq
        %v662 = vshrl.u32 %v661, 7
        %v663 = vsub.s32 0, %v662
        %v664 = vrot.slane %v656, %v663
        %vm665 = vcmp.eq.s32.totalorder %v585, %v660
        %vm666 = vcmp.eq.s32.totalorder %v586, %v664
        %vm667 = vcmp.eq.s32.totalorder %v587, %v660
        %vm668 = vcmp.eq.s32.totalorder %v588, %v664
        %vm669 = vcmp.eq.s32.totalorder %v589, %v660
        %vm670 = vcmp.eq.s32.totalorder %v590, %v664
        %v671 = vsel %vm665, 1, 0
        %v672 = vsel %vm666, 1, 0
        %v673 = vsel %vm667, 1, 0
        %v674 = vsel %vm668, 1, 0
        %v675 = vsel %vm669, 1, 0
        %v676 = vsel %vm670, 1, 0
        %v677 = vcvt.s32.f32 %v671
        %v678 = vcvt.s32.f32 %v672
        %v679 = vcvt.s32.f32 %v673
        %v680 = vcvt.s32.f32 %v674
        %v681 = vcvt.s32.f32 %v675
        %v682 = vcvt.s32.f32 %v676
        %v683 = vlaneseq
        %v684 = vshrl.u32 %v683, 7
        %v685 = vsub.s32 0, %v684
        %v686 = vrot.slane %v261, %v685
        %v687 = vlaneseq
        %v688 = vshrl.u32 %v687, 7
        %v689 = vsub.s32 2, %v688
        %v690 = vrot.slane %v261, %v689
        %v693 = vlaneseq
        %v694 = vshrl.u32 %v693, 7
        %v695 = vsub.s32 0, %v694
        %v696 = vrot.slane %v686, %v695
        %v697 = vlaneseq
        %v698 = vshrl.u32 %v697, 7
        %v699 = vsub.s32 0, %v698
        %v700 = vrot.slane %v690, %v699
        %v701 = vmul.f32 %v696, %v677
        %v702 = vmul.f32 %v700, %v678
        %v703 = vmul.f32 %v696, %v679
        %v704 = vmul.f32 %v700, %v680
        %v705 = vmul.f32 %v696, %v681
        %v706 = vmul.f32 %v700, %v682
        %v707 = vadd.f32 %v643, %v701
        %v708 = vadd.f32 %v644, %v702
        %v709 = vadd.f32 %v645, %v703
        %v710 = vadd.f32 %v646, %v704
        %v711 = vadd.f32 %v647, %v705
        %v712 = vadd.f32 %v648, %v706
        %v713 = vmul.f32 %v707, %v515
        %v714 = vmul.f32 %v708, %v517
        %v715 = vmul.f32 %v709, %v521
        %v716 = vmul.f32 %v710, %v523
        %v717 = vmul.f32 %v711, %v527
        %v718 = vmul.f32 %v712, %v529
        %v719 = vmul.f32 %v707, %v533
        %v720 = vmul.f32 %v708, %v535
        %v721 = vmul.f32 %v709, %v539
        %v722 = vmul.f32 %v710, %v541
        %v723 = vmul.f32 %v711, %v545
        %v724 = vmul.f32 %v712, %v547
        %v725 = vmul.f32 %v707, %v551
        %v726 = vmul.f32 %v708, %v553
        %v727 = vmul.f32 %v709, %v557
        %v728 = vmul.f32 %v710, %v559
        %v729 = vmul.f32 %v711, %v563
        %v730 = vmul.f32 %v712, %v565
        %v731 = vmul.f32 %v707, %v569
        %v732 = vmul.f32 %v708, %v571
        %v733 = vmul.f32 %v709, %v575
        %v734 = vmul.f32 %v710, %v577
        %v735 = vmul.f32 %v711, %v581
        %v736 = vmul.f32 %v712, %v583
        %v737 = vadd.f32 %v713, %v715
        %v738 = vadd.f32 %v737, %v717
        %v739 = vrot.slane %v738, 4
        %v740 = vadd.f32 %v738, %v739
        %v741 = vrot.slane %v740, 2
        %v742 = vadd.f32 %v740, %v741
        %v743 = vrot.slane %v742, 1
        %v744 = vadd.f32 %v742, %v743
        %v745 = vadd.f32 %v714, %v716
        %v746 = vadd.f32 %v745, %v718
        %v747 = vrot.slane %v746, 4
        %v748 = vadd.f32 %v746, %v747
        %v749 = vrot.slane %v748, 2
        %v750 = vadd.f32 %v748, %v749
        %v751 = vrot.slane %v750, 1
        %v752 = vadd.f32 %v750, %v751
        %v753 = vadd.f32 %v719, %v721
        %v754 = vadd.f32 %v753, %v723
        %v755 = vrot.slane %v754, 4
        %v756 = vadd.f32 %v754, %v755
        %v757 = vrot.slane %v756, 2
        %v758 = vadd.f32 %v756, %v757
        %v759 = vrot.slane %v758, 1
        %v760 = vadd.f32 %v758, %v759
        %v761 = vadd.f32 %v720, %v722
        %v762 = vadd.f32 %v761, %v724
        %v763 = vrot.slane %v762, 4
        %v764 = vadd.f32 %v762, %v763
        %v765 = vrot.slane %v764, 2
        %v766 = vadd.f32 %v764, %v765
        %v767 = vrot.slane %v766, 1
        %v768 = vadd.f32 %v766, %v767
        %v769 = vadd.f32 %v725, %v727
        %v770 = vadd.f32 %v769, %v729
        %v771 = vrot.slane %v770, 4
        %v772 = vadd.f32 %v770, %v771
        %v773 = vrot.slane %v772, 2
        %v774 = vadd.f32 %v772, %v773
        %v775 = vrot.slane %v774, 1
        %v776 = vadd.f32 %v774, %v775
        %v777 = vadd.f32 %v726, %v728
        %v778 = vadd.f32 %v777, %v730
        %v779 = vrot.slane %v778, 4
        %v780 = vadd.f32 %v778, %v779
        %v781 = vrot.slane %v780, 2
        %v782 = vadd.f32 %v780, %v781
        %v783 = vrot.slane %v782, 1
        %v784 = vadd.f32 %v782, %v783
        %v785 = vadd.f32 %v731, %v733
        %v786 = vadd.f32 %v785, %v735
        %v787 = vrot.slane %v786, 4
        %v788 = vadd.f32 %v786, %v787
        %v789 = vrot.slane %v788, 2
        %v790 = vadd.f32 %v788, %v789
        %v791 = vrot.slane %v790, 1
        %v792 = vadd.f32 %v790, %v791
        %v793 = vadd.f32 %v732, %v734
        %v794 = vadd.f32 %v793, %v736
        %v795 = vrot.slane %v794, 4
        %v796 = vadd.f32 %v794, %v795
        %v797 = vrot.slane %v796, 2
        %v798 = vadd.f32 %v796, %v797
        %v799 = vrot.slane %v798, 1
        %v800 = vadd.f32 %v798, %v799
        %v809 = vcombine.low %v744, %v752
        %v810 = vcombine.low %v760, %v768
        %v811 = vcombine.low %v776, %v784
        %v812 = vcombine.low %v792, %v800
        %v813 = vrot.slane %v810, 7
        %vm814 = vcmask 1041409
        %v815 = vsel %vm814, %v813, %v809
        %vm816 = vcmask 1045509
        %v817 = vsel %vm816, %v813, %v815
        %v818 = vrot.slane %v811, 6
        %vm819 = vcmask 1042434
        %v820 = vsel %vm819, %v818, %v817
        %vm821 = vcmask 1046534
        %v822 = vsel %vm821, %v818, %v820
        %v823 = vrot.slane %v812, 5
        %vm824 = vcmask 1043459
        %v825 = vsel %vm824, %v823, %v822
        %vm826 = vcmask 1047559
        %v827 = vsel %vm826, %v823, %v825
        %829 = vst [vmem:[%s230] sm:$0xff] %v827
        %s830 = sand.u32 %s136, 1
        %s831 = scalar_lea.sflag [#allocation3], %s830
        %s832 = sand.u32 %s136, 1
        %s833 = smul.addr %s832, 8
        %s834 = scalar_lea.vmem [#allocation2], %s833
        // Predicated region
        $region37: #{tpu_custom_call.1} parent=35 // pred_check
          %p835 = pneg %p146
        $region38: #{tpu_custom_call.1} parent=35 // pred_check_branch
          %837 = sbr.rel (%p835) target = $region40
        $region39: #{tpu_custom_call.1} parent=35 // pred_region
          %s838 = smul.u32 2, %s23
          %s840 = ssub.s32 128, 128
          %841 = vsyncadd %s831, %s840
          %s842 = smul.addr %s22, 2
          %s843 = sadd.s32 %s838, %s842
          %s844 = smul.addr %s843, 64
          %s845 = scalar_lea.hbm %s4, %s844
          %s847 = sshll.u32 %s834, 4
          %s848 = int_to_ptr.vmem [resolvable:$true] %s847
          %850 = dma.vmem_to_hbm [thread:$0]  %s848, 128, %s845, %s831
        $region40: #{tpu_custom_call.1} parent=35 // pred_fallthru
          _
      $region36: #{tpu_custom_call.1} parent=5 // pred_fallthru
        _
      %p851 = scmp.le.s32.totalorder 2, %s13
      // Predicated region
      $region41: #{tpu_custom_call.1} parent=5 // pred_check
        %p852 = pneg %p851
      $region42: #{tpu_custom_call.1} parent=5 // pred_check_branch
        %854 = sbr.rel (%p852) target = $region44
      $region43: #{tpu_custom_call.1} parent=5 // pred_region
        %s855 = ssub.s32 %s13, 2
        // Predicated region
        $region45: #{tpu_custom_call.1} parent=43 // pred_check
          %p856 = pneg %p152
        $region46: #{tpu_custom_call.1} parent=43 // pred_check_branch
          %858 = sbr.rel (%p856) target = $region48
        $region47: #{tpu_custom_call.1} parent=43 // pred_region
          %s859 = sand.u32 %s137, 1
          %s860 = scalar_lea.sflag [#allocation3], %s859
          %s861 = sand.u32 %s137, 1
          %s862 = smul.addr %s861, 8
          %s863 = scalar_lea.vmem [#allocation2], %s862
          %864 = dma.done %s860, 128
        $region48: #{tpu_custom_call.1} parent=43 // pred_fallthru
          _
      $region44: #{tpu_custom_call.1} parent=5 // pred_fallthru
        _
    $region6: #{tpu_custom_call.1} parent=1 // loop_footer
      %s17 = sadd.s32 1, %s13
    $region7: #{tpu_custom_call.1} parent=1 // loop_footer_branch
      %12 = sbr.rel target = $region3
    $region8: #{tpu_custom_call.1} parent=1 // loop_exit
      _
    %865 = vsyncpa [#allocation3], 1
    %s866 = scalar_lea.sflag [#allocation3], 1
    %867 = vsyncpa %s866, 1

</llo_original>
